<compile_context>
chip_gen: v5e
topology: v5e:2x2
jax: 0.10.0
libtpu: 0.0.40
codegen_flags: <defaults>
</compile_context>

<pallas_src>
import math
import functools

import jax
import jax.numpy as jnp
from jax.experimental import pallas as pl
from jax.experimental.pallas import tpu as pltpu


def _softplus(x):
    # Numerically stable softplus, == torch.nn.functional.softplus(x, beta=1).
    return jnp.maximum(x, 0.0) + jnp.log(1.0 + jnp.exp(-jnp.abs(x)))


def fused_gnn_kernel(*refs, dims):
    """All Layer_EIB_2DPE layers + power-norm/precoding, fused, channel-first.

    refs (inputs, then outputs):
      A0  (cin0, N)     input features, N = BR*L*K (k fastest, br slowest)
      V   (U, N)        precoder directions
      MK  (N, N)        mean-over-K-then-broadcast operator (same (br,l) group)
      ML  (N, N)        mean-over-L-then-broadcast operator (same (br,k) group)
      SEL (N, BR)       per-batch-row column selector for the final I_XZ sum
      W_i (3*c2p_i, cin_i)  stacked [P1; 0.1*P3; 0.1*P4], zero-padded row blocks
      per hidden layer i: gamma_i (c2,1), beta_i (c2,1), E1_i (cout,N), E2_i (cout,N)
    outputs:
      F   (U, N)        Fhat (lane-dense store)
      IXZ (1, BR)
    """
    n_layers = len(dims) - 1
    n_hidden = n_layers - 1
    assert len(refs) == 5 + n_layers + 4 * n_hidden + 2

    a_ref, v_ref, mk_ref, ml_ref, sel_ref = refs[0:5]
    w_refs = refs[5:5 + n_layers]
    h_refs = refs[5 + n_layers:5 + n_layers + 4 * n_hidden]
    f_ref, ixz_ref = refs[-2], refs[-1]

    MK = mk_ref[...]                               # (N, N) f32
    ML = ml_ref[...]                               # (N, N) f32

    x = a_ref[...]                                 # (cin0, N) f32
    N = x.shape[1]
    ixz_cols = jnp.zeros((1, N), jnp.float32)

    # Static Python loop over layers (3 iters, shapes differ per layer); the hot
    # per-sample inner loop has been removed algebraically.
    for i in range(n_layers):
        cout = dims[i + 1]
        c2 = 2 * cout
        c2p = ((c2 + 7) // 8) * 8                  # sublane-aligned block stride

        # One channel-mix matmul for all three branches (weights pre-stacked).
        u = jnp.dot(w_refs[i][...], x, preferred_element_type=jnp.float32)  # (3*c2p, N)
        # y = P1@x + (0.1*P3@x) @ MK + (0.1*P4@x) @ ML   (aggregation as column ops)
        y = (u[0:c2p, :]
             + jnp.dot(u[c2p:2 * c2p, :], MK, preferred_element_type=jnp.float32)
             + jnp.dot(u[2 * c2p:3 * c2p, :], ML, preferred_element_type=jnp.float32))
        y = y[0:c2, :]

        if i != n_layers - 1:
            # is_transfer=True: ReLU (applied before BN, as in the reference).
            y = jnp.maximum(y, 0.0)

            # is_BN=True: BatchNorm2d in training mode — per-channel batch stats
            # over all N = BR*L*K positions, biased variance, eps=1e-5, affine.
            # Single-pass stats; clamp guards fp cancellation in E[y^2]-E[y]^2.
            gamma = h_refs[4 * i][...]             # (c2, 1)
            beta = h_refs[4 * i + 1][...]          # (c2, 1)
            inv_n = 1.0 / N
            s1 = jnp.sum(y, axis=1, keepdims=True)
            s2 = jnp.sum(y * y, axis=1, keepdims=True)
            mean_c = s1 * inv_n
            var_c = jnp.maximum(s2 * inv_n - mean_c * mean_c, 0.0)
            y = (y - mean_c) * jax.lax.rsqrt(var_c + 1e-5) * gamma + beta

            # reparameterize_diagonal(mode='diag'): first half = mean,
            # softplus(second half)+1e-10 = std.  Row split is sublane-aligned.
            mu = y[0:cout, :]
            std = _softplus(y[cout:c2, :]) + 1e-10

            # Closed-form MC estimate of I(X;Z) given sample moments of eps.
            e1 = h_refs[4 * i + 2][...]            # (cout, N) = mean_s eps
            e2 = h_refs[4 * i + 3][...]            # (cout, N) = mean_s eps^2
            contrib = (-jnp.log(std) + 0.5 * mu * mu
                       + (mu * std) * e1 + 0.5 * (std * std - 1.0) * e2)
            ixz_cols = ixz_cols + jnp.sum(contrib, axis=0, keepdims=True)

            x = mu                                 # A_output = A[:, :output_dim]
        else:
            # last layer: is_transfer=False, is_BN=False; its I_XZ is discarded
            # by the reference forward, so it is not computed.
            x = y[0:cout, :]                       # (1, N)

    # Power normalization over L + precoding (all lane-dense):
    #   Phat = p / ||p||_L * sqrt(L) = p * rsqrt(mean_L p^2)
    # (no eps guard — matches the reference).
    p = x                                          # (1, N)
    mean_l_p2 = jnp.dot(p * p, ML, preferred_element_type=jnp.float32)   # (1, N)
    ph = p * jax.lax.rsqrt(mean_l_p2)
    f_ref[...] = v_ref[...] * ph                   # (U, N)
    ixz_ref[...] = jnp.dot(ixz_cols, sel_ref[...], preferred_element_type=jnp.float32)


class EIBGNN2DLKPowerPallas:
    """JAX/Pallas re-implementation of EIB_GNN2D_L_K_Power's forward pass."""

    def __init__(self, input_dim, hidden_dim, output_dim, sample_size,
                 batch_size, key):
        self.dim = [input_dim] + list(hidden_dim) + [output_dim]
        self.sample_size = sample_size
        self.BATCH_SIZE = batch_size
        self.params = []
        for i in range(len(self.dim) - 1):
            cin, cout = self.dim[i], self.dim[i + 1]
            c2 = 2 * cout
            c2p = ((c2 + 7) // 8) * 8
            ini = math.sqrt(3.0 / cout / 2.0 / cin)
            key, k1, k3, k4 = jax.random.split(key, 4)
            P1 = jax.random.uniform(k1, (c2, cin), jnp.float32, -ini, ini)
            P3 = jax.random.uniform(k3, (c2, cin), jnp.float32, -ini, ini)
            P4 = jax.random.uniform(k4, (c2, cin), jnp.float32, -ini, ini)
            # Stack [P1; 0.1*P3; 0.1*P4] once, each block zero-padded to a
            # sublane-aligned stride so the kernel does one channel-mix matmul
            # per layer and only aligned row slices.
            W = jnp.zeros((3 * c2p, cin), jnp.float32)
            W = W.at[0:c2].set(P1)
            W = W.at[c2p:c2p + c2].set(0.1 * P3)
            W = W.at[2 * c2p:2 * c2p + c2].set(0.1 * P4)
            self.params.append({
                "W": W,
                "gamma": jnp.ones((c2, 1), jnp.float32),   # BN weight init
                "beta": jnp.zeros((c2, 1), jnp.float32),   # BN bias init
            })

    def __call__(self, Hhat, Vhat, nbrOfRealizations, L, K, U, key):
        B = self.BATCH_SIZE
        R = nbrOfRealizations
        BR = B * R
        N = BR * L * K
        dims = tuple(self.dim)
        n_layers = len(dims) - 1
        n_hidden = n_layers - 1
        assert dims[0] == 2 * U

        # Channel-first layout (matches the reference NCHW), flattened over
        # (BR, L, K) with K fastest: in-kernel tensors are (channels, N).
        Hre = jnp.real(Hhat).reshape(BR, L, K, U).astype(jnp.float32)
        Him = jnp.imag(Hhat).reshape(BR, L, K, U).astype(jnp.float32)
        A0 = jnp.concatenate([Hre, Him], axis=-1)                 # (BR, L, K, 2U)
        A0_t = jnp.transpose(A0, (3, 0, 1, 2)).reshape(2 * U, N)
        V_t = jnp.transpose(Vhat.reshape(BR, L, K, U).astype(jnp.float32),
                            (3, 0, 1, 2)).reshape(U, N)

        # Constant aggregation / selection operators; columns n = (br, l, k).
        n_idx = jnp.arange(N)
        br_idx = n_idx // (L * K)
        l_idx = (n_idx // K) % L
        k_idx = n_idx % K
        same_br = br_idx[:, None] == br_idx[None, :]
        MK = (same_br & (l_idx[:, None] == l_idx[None, :])).astype(jnp.float32) / K
        ML = (same_br & (k_idx[:, None] == k_idx[None, :])).astype(jnp.float32) / L
        SEL = (br_idx[:, None] == jnp.arange(BR)[None, :]).astype(jnp.float32)

        # Reparameterization noise drawn on the host; only the per-element
        # sample moments are needed by the closed-form IB estimate, so the
        # traffic into the kernel is independent of sample_size.
        weight_args = [self.params[i]["W"] for i in range(n_layers)]
        hidden_args = []
        for i in range(n_hidden):
            cout = dims[i + 1]
            key, ksub = jax.random.split(key)
            eps = jax.random.normal(ksub, (self.sample_size, cout, N), jnp.float32)
            hidden_args += [self.params[i]["gamma"], self.params[i]["beta"],
                            jnp.mean(eps, axis=0), jnp.mean(eps * eps, axis=0)]

        kernel = functools.partial(fused_gnn_kernel, dims=dims)
        vmem = pl.BlockSpec(memory_space=pltpu.MemorySpace.VMEM)
        n_in = 5 + n_layers + 4 * n_hidden
        compiler_params = (pltpu.CompilerParams(vmem_limit_bytes=32 * 1024 * 1024)
                           if hasattr(pltpu, "CompilerParams") else None)

        Fhat_t, ixz = pl.pallas_call(
            kernel,
            out_shape=(jax.ShapeDtypeStruct((U, N), jnp.float32),
                       jax.ShapeDtypeStruct((1, BR), jnp.float32)),
            in_specs=[vmem] * n_in,
            out_specs=(vmem, vmem),
            compiler_params=compiler_params,
        )(A0_t, V_t, MK, ML, SEL, *weight_args, *hidden_args)

        Fhat_u = jnp.transpose(Fhat_t.reshape(U, B, R, L, K), (1, 2, 3, 4, 0))
        I_XZ_tot = ixz[0]
        return Fhat_u, I_XZ_tot


if __name__ == "__main__":
    key = jax.random.PRNGKey(0)
    B, R, L, K, U = 2, 2, 8, 8, 4                 # batch, realizations, APs, users, antennas
    input_dim, hidden_dim, output_dim = 2 * U, (8, 8), 1
    sample_size = 4

    key, kparam, khr, khi, kv, keps = jax.random.split(key, 6)
    model = EIBGNN2DLKPowerPallas(input_dim, hidden_dim, output_dim,
                                  sample_size, B, kparam)

    Hhat = (jax.random.normal(khr, (B, R, L, K, U), jnp.float32)
            + 1j * jax.random.normal(khi, (B, R, L, K, U), jnp.float32)
            ).astype(jnp.complex64)
    Vhat = jax.random.normal(kv, (B, R, L, K, U), jnp.float32)

    Fhat_u, I_XZ_tot = model(Hhat, Vhat, R, L, K, U, keps)
    jax.block_until_ready((Fhat_u, I_XZ_tot))

    assert Fhat_u.shape == (B, R, L, K, U)
    assert I_XZ_tot.shape == (B * R,)
    assert Fhat_u.dtype == jnp.float32
    assert bool(jnp.isfinite(Fhat_u).all())
    assert bool(jnp.isfinite(I_XZ_tot).all())
    print("KERNEL_OK")
</pallas_src>

<mosaic_0001>
module attributes {stable_mosaic.version = 11 : i64} {
  func.func @fused_gnn_kernel(%arg0: memref<8x256xf32, #tpu.memory_space<vmem>>, %arg1: memref<4x256xf32, #tpu.memory_space<vmem>>, %arg2: memref<256x256xf32, #tpu.memory_space<vmem>>, %arg3: memref<256x256xf32, #tpu.memory_space<vmem>>, %arg4: memref<256x4xf32, #tpu.memory_space<vmem>>, %arg5: memref<48x8xf32, #tpu.memory_space<vmem>>, %arg6: memref<48x8xf32, #tpu.memory_space<vmem>>, %arg7: memref<24x8xf32, #tpu.memory_space<vmem>>, %arg8: memref<16x1xf32, #tpu.memory_space<vmem>>, %arg9: memref<16x1xf32, #tpu.memory_space<vmem>>, %arg10: memref<8x256xf32, #tpu.memory_space<vmem>>, %arg11: memref<8x256xf32, #tpu.memory_space<vmem>>, %arg12: memref<16x1xf32, #tpu.memory_space<vmem>>, %arg13: memref<16x1xf32, #tpu.memory_space<vmem>>, %arg14: memref<8x256xf32, #tpu.memory_space<vmem>>, %arg15: memref<8x256xf32, #tpu.memory_space<vmem>>, %arg16: memref<4x256xf32, #tpu.memory_space<vmem>>, %arg17: memref<1x4xf32, #tpu.memory_space<vmem>>) attributes {dimension_semantics = [], scalar_prefetch = 0 : i64, scratch_operands = 0 : i64, tpu.core_type = #tpu.core_type<tc>} {
    %c0 = arith.constant 0 : index
    %c0_0 = arith.constant 0 : index
    %0 = vector.load %arg2[%c0, %c0_0] : memref<256x256xf32, #tpu.memory_space<vmem>>, vector<256x256xf32>
    %c0_1 = arith.constant 0 : index
    %c0_2 = arith.constant 0 : index
    %1 = vector.load %arg3[%c0_1, %c0_2] : memref<256x256xf32, #tpu.memory_space<vmem>>, vector<256x256xf32>
    %c0_3 = arith.constant 0 : index
    %c0_4 = arith.constant 0 : index
    %2 = vector.load %arg0[%c0_3, %c0_4] : memref<8x256xf32, #tpu.memory_space<vmem>>, vector<8x256xf32>
    %cst = arith.constant 0.000000e+00 : f32
    %3 = vector.broadcast %cst : f32 to vector<1x256xf32>
    %c0_5 = arith.constant 0 : index
    %c0_6 = arith.constant 0 : index
    %4 = vector.load %arg5[%c0_5, %c0_6] : memref<48x8xf32, #tpu.memory_space<vmem>>, vector<48x8xf32>
    %cst_7 = arith.constant dense<0.000000e+00> : vector<48x256xf32>
    %5 = tpu.matmul %4, %2, %cst_7 {dimension_numbers = #tpu.dot_dimension_numbers<[1], [0], [0], [1], [0, 0, 1, 1], [], []>} : vector<48x8xf32>, vector<8x256xf32>, vector<48x256xf32> -> vector<48x256xf32>
    %6 = vector.extract_strided_slice %5 {offsets = [0, 0], sizes = [16, 256], strides = [1, 1]} : vector<48x256xf32> to vector<16x256xf32>
    %7 = vector.extract_strided_slice %5 {offsets = [16, 0], sizes = [16, 256], strides = [1, 1]} : vector<48x256xf32> to vector<16x256xf32>
    %cst_8 = arith.constant dense<0.000000e+00> : vector<16x256xf32>
    %8 = tpu.matmul %7, %0, %cst_8 {dimension_numbers = #tpu.dot_dimension_numbers<[1], [0], [0], [1], [0, 0, 1, 1], [], []>} : vector<16x256xf32>, vector<256x256xf32>, vector<16x256xf32> -> vector<16x256xf32>
    %9 = arith.addf %6, %8 : vector<16x256xf32>
    %10 = vector.extract_strided_slice %5 {offsets = [32, 0], sizes = [16, 256], strides = [1, 1]} : vector<48x256xf32> to vector<16x256xf32>
    %cst_9 = arith.constant dense<0.000000e+00> : vector<16x256xf32>
    %11 = tpu.matmul %10, %1, %cst_9 {dimension_numbers = #tpu.dot_dimension_numbers<[1], [0], [0], [1], [0, 0, 1, 1], [], []>} : vector<16x256xf32>, vector<256x256xf32>, vector<16x256xf32> -> vector<16x256xf32>
    %12 = arith.addf %9, %11 : vector<16x256xf32>
    %cst_10 = arith.constant 0.000000e+00 : f32
    %13 = vector.broadcast %cst_10 : f32 to vector<16x256xf32>
    %14 = arith.maximumf %12, %13 : vector<16x256xf32>
    %c0_11 = arith.constant 0 : index
    %c0_12 = arith.constant 0 : index
    %15 = vector.load %arg8[%c0_11, %c0_12] : memref<16x1xf32, #tpu.memory_space<vmem>>, vector<16x1xf32>
    %c0_13 = arith.constant 0 : index
    %c0_14 = arith.constant 0 : index
    %16 = vector.load %arg9[%c0_13, %c0_14] : memref<16x1xf32, #tpu.memory_space<vmem>>, vector<16x1xf32>
    %cst_15 = arith.constant dense<0.000000e+00> : vector<16xf32>
    %17 = vector.multi_reduction <add>, %14, %cst_15 [1] : vector<16x256xf32> to vector<16xf32>
    %18 = vector.shape_cast %17 : vector<16xf32> to vector<16x1xf32>
    %19 = arith.mulf %14, %14 : vector<16x256xf32>
    %cst_16 = arith.constant dense<0.000000e+00> : vector<16xf32>
    %20 = vector.multi_reduction <add>, %19, %cst_16 [1] : vector<16x256xf32> to vector<16xf32>
    %21 = vector.shape_cast %20 : vector<16xf32> to vector<16x1xf32>
    %cst_17 = arith.constant 3.906250e-03 : f32
    %22 = vector.broadcast %cst_17 : f32 to vector<16x1xf32>
    %23 = arith.mulf %18, %22 : vector<16x1xf32>
    %cst_18 = arith.constant 3.906250e-03 : f32
    %24 = vector.broadcast %cst_18 : f32 to vector<16x1xf32>
    %25 = arith.mulf %21, %24 : vector<16x1xf32>
    %26 = arith.mulf %23, %23 : vector<16x1xf32>
    %27 = arith.subf %25, %26 : vector<16x1xf32>
    %cst_19 = arith.constant 0.000000e+00 : f32
    %28 = vector.broadcast %cst_19 : f32 to vector<16x1xf32>
    %29 = arith.maximumf %27, %28 : vector<16x1xf32>
    %30 = vector.broadcast %23 : vector<16x1xf32> to vector<16x256xf32>
    %31 = arith.subf %14, %30 : vector<16x256xf32>
    %cst_20 = arith.constant 9.99999974E-6 : f32
    %32 = vector.broadcast %cst_20 : f32 to vector<16x1xf32>
    %33 = arith.addf %29, %32 : vector<16x1xf32>
    %34 = math.rsqrt %33 : vector<16x1xf32>
    %35 = vector.broadcast %34 : vector<16x1xf32> to vector<16x256xf32>
    %36 = arith.mulf %31, %35 : vector<16x256xf32>
    %37 = vector.broadcast %15 : vector<16x1xf32> to vector<16x256xf32>
    %38 = arith.mulf %36, %37 : vector<16x256xf32>
    %39 = vector.broadcast %16 : vector<16x1xf32> to vector<16x256xf32>
    %40 = arith.addf %38, %39 : vector<16x256xf32>
    %41 = vector.extract_strided_slice %40 {offsets = [0, 0], sizes = [8, 256], strides = [1, 1]} : vector<16x256xf32> to vector<8x256xf32>
    %42 = vector.extract_strided_slice %40 {offsets = [8, 0], sizes = [8, 256], strides = [1, 1]} : vector<16x256xf32> to vector<8x256xf32>
    %cst_21 = arith.constant 0.000000e+00 : f32
    %43 = vector.broadcast %cst_21 : f32 to vector<8x256xf32>
    %44 = arith.maximumf %42, %43 : vector<8x256xf32>
    %45 = math.absf %42 : vector<8x256xf32>
    %cst_22 = arith.constant 0.000000e+00 : f32
    %46 = vector.broadcast %cst_22 : f32 to vector<8x256xf32>
    %47 = arith.subf %46, %45 : vector<8x256xf32>
    %48 = math.exp %47 : vector<8x256xf32>
    %cst_23 = arith.constant 1.000000e+00 : f32
    %49 = vector.broadcast %cst_23 : f32 to vector<8x256xf32>
    %50 = arith.addf %49, %48 : vector<8x256xf32>
    %51 = math.log %50 : vector<8x256xf32>
    %52 = arith.addf %44, %51 : vector<8x256xf32>
    %cst_24 = arith.constant 1.000000e-10 : f32
    %53 = vector.broadcast %cst_24 : f32 to vector<8x256xf32>
    %54 = arith.addf %52, %53 : vector<8x256xf32>
    %c0_25 = arith.constant 0 : index
    %c0_26 = arith.constant 0 : index
    %55 = vector.load %arg10[%c0_25, %c0_26] : memref<8x256xf32, #tpu.memory_space<vmem>>, vector<8x256xf32>
    %c0_27 = arith.constant 0 : index
    %c0_28 = arith.constant 0 : index
    %56 = vector.load %arg11[%c0_27, %c0_28] : memref<8x256xf32, #tpu.memory_space<vmem>>, vector<8x256xf32>
    %57 = math.log %54 : vector<8x256xf32>
    %cst_29 = arith.constant 0.000000e+00 : f32
    %58 = vector.broadcast %cst_29 : f32 to vector<8x256xf32>
    %59 = arith.subf %58, %57 : vector<8x256xf32>
    %cst_30 = arith.constant 5.000000e-01 : f32
    %60 = vector.broadcast %cst_30 : f32 to vector<8x256xf32>
    %61 = arith.mulf %60, %41 : vector<8x256xf32>
    %62 = arith.mulf %61, %41 : vector<8x256xf32>
    %63 = arith.addf %59, %62 : vector<8x256xf32>
    %64 = arith.mulf %41, %54 : vector<8x256xf32>
    %65 = arith.mulf %64, %55 : vector<8x256xf32>
    %66 = arith.addf %63, %65 : vector<8x256xf32>
    %67 = arith.mulf %54, %54 : vector<8x256xf32>
    %cst_31 = arith.constant 1.000000e+00 : f32
    %68 = vector.broadcast %cst_31 : f32 to vector<8x256xf32>
    %69 = arith.subf %67, %68 : vector<8x256xf32>
    %cst_32 = arith.constant 5.000000e-01 : f32
    %70 = vector.broadcast %cst_32 : f32 to vector<8x256xf32>
    %71 = arith.mulf %70, %69 : vector<8x256xf32>
    %72 = arith.mulf %71, %56 : vector<8x256xf32>
    %73 = arith.addf %66, %72 : vector<8x256xf32>
    %cst_33 = arith.constant dense<0.000000e+00> : vector<256xf32>
    %74 = vector.multi_reduction <add>, %73, %cst_33 [0] : vector<8x256xf32> to vector<256xf32>
    %75 = vector.shape_cast %74 : vector<256xf32> to vector<1x256xf32>
    %76 = arith.addf %3, %75 : vector<1x256xf32>
    %c0_34 = arith.constant 0 : index
    %c0_35 = arith.constant 0 : index
    %77 = vector.load %arg6[%c0_34, %c0_35] : memref<48x8xf32, #tpu.memory_space<vmem>>, vector<48x8xf32>
    %cst_36 = arith.constant dense<0.000000e+00> : vector<48x256xf32>
    %78 = tpu.matmul %77, %41, %cst_36 {dimension_numbers = #tpu.dot_dimension_numbers<[1], [0], [0], [1], [0, 0, 1, 1], [], []>} : vector<48x8xf32>, vector<8x256xf32>, vector<48x256xf32> -> vector<48x256xf32>
    %79 = vector.extract_strided_slice %78 {offsets = [0, 0], sizes = [16, 256], strides = [1, 1]} : vector<48x256xf32> to vector<16x256xf32>
    %80 = vector.extract_strided_slice %78 {offsets = [16, 0], sizes = [16, 256], strides = [1, 1]} : vector<48x256xf32> to vector<16x256xf32>
    %cst_37 = arith.constant dense<0.000000e+00> : vector<16x256xf32>
    %81 = tpu.matmul %80, %0, %cst_37 {dimension_numbers = #tpu.dot_dimension_numbers<[1], [0], [0], [1], [0, 0, 1, 1], [], []>} : vector<16x256xf32>, vector<256x256xf32>, vector<16x256xf32> -> vector<16x256xf32>
    %82 = arith.addf %79, %81 : vector<16x256xf32>
    %83 = vector.extract_strided_slice %78 {offsets = [32, 0], sizes = [16, 256], strides = [1, 1]} : vector<48x256xf32> to vector<16x256xf32>
    %cst_38 = arith.constant dense<0.000000e+00> : vector<16x256xf32>
    %84 = tpu.matmul %83, %1, %cst_38 {dimension_numbers = #tpu.dot_dimension_numbers<[1], [0], [0], [1], [0, 0, 1, 1], [], []>} : vector<16x256xf32>, vector<256x256xf32>, vector<16x256xf32> -> vector<16x256xf32>
    %85 = arith.addf %82, %84 : vector<16x256xf32>
    %cst_39 = arith.constant 0.000000e+00 : f32
    %86 = vector.broadcast %cst_39 : f32 to vector<16x256xf32>
    %87 = arith.maximumf %85, %86 : vector<16x256xf32>
    %c0_40 = arith.constant 0 : index
    %c0_41 = arith.constant 0 : index
    %88 = vector.load %arg12[%c0_40, %c0_41] : memref<16x1xf32, #tpu.memory_space<vmem>>, vector<16x1xf32>
    %c0_42 = arith.constant 0 : index
    %c0_43 = arith.constant 0 : index
    %89 = vector.load %arg13[%c0_42, %c0_43] : memref<16x1xf32, #tpu.memory_space<vmem>>, vector<16x1xf32>
    %cst_44 = arith.constant dense<0.000000e+00> : vector<16xf32>
    %90 = vector.multi_reduction <add>, %87, %cst_44 [1] : vector<16x256xf32> to vector<16xf32>
    %91 = vector.shape_cast %90 : vector<16xf32> to vector<16x1xf32>
    %92 = arith.mulf %87, %87 : vector<16x256xf32>
    %cst_45 = arith.constant dense<0.000000e+00> : vector<16xf32>
    %93 = vector.multi_reduction <add>, %92, %cst_45 [1] : vector<16x256xf32> to vector<16xf32>
    %94 = vector.shape_cast %93 : vector<16xf32> to vector<16x1xf32>
    %cst_46 = arith.constant 3.906250e-03 : f32
    %95 = vector.broadcast %cst_46 : f32 to vector<16x1xf32>
    %96 = arith.mulf %91, %95 : vector<16x1xf32>
    %cst_47 = arith.constant 3.906250e-03 : f32
    %97 = vector.broadcast %cst_47 : f32 to vector<16x1xf32>
    %98 = arith.mulf %94, %97 : vector<16x1xf32>
    %99 = arith.mulf %96, %96 : vector<16x1xf32>
    %100 = arith.subf %98, %99 : vector<16x1xf32>
    %cst_48 = arith.constant 0.000000e+00 : f32
    %101 = vector.broadcast %cst_48 : f32 to vector<16x1xf32>
    %102 = arith.maximumf %100, %101 : vector<16x1xf32>
    %103 = vector.broadcast %96 : vector<16x1xf32> to vector<16x256xf32>
    %104 = arith.subf %87, %103 : vector<16x256xf32>
    %cst_49 = arith.constant 9.99999974E-6 : f32
    %105 = vector.broadcast %cst_49 : f32 to vector<16x1xf32>
    %106 = arith.addf %102, %105 : vector<16x1xf32>
    %107 = math.rsqrt %106 : vector<16x1xf32>
    %108 = vector.broadcast %107 : vector<16x1xf32> to vector<16x256xf32>
    %109 = arith.mulf %104, %108 : vector<16x256xf32>
    %110 = vector.broadcast %88 : vector<16x1xf32> to vector<16x256xf32>
    %111 = arith.mulf %109, %110 : vector<16x256xf32>
    %112 = vector.broadcast %89 : vector<16x1xf32> to vector<16x256xf32>
    %113 = arith.addf %111, %112 : vector<16x256xf32>
    %114 = vector.extract_strided_slice %113 {offsets = [0, 0], sizes = [8, 256], strides = [1, 1]} : vector<16x256xf32> to vector<8x256xf32>
    %115 = vector.extract_strided_slice %113 {offsets = [8, 0], sizes = [8, 256], strides = [1, 1]} : vector<16x256xf32> to vector<8x256xf32>
    %cst_50 = arith.constant 0.000000e+00 : f32
    %116 = vector.broadcast %cst_50 : f32 to vector<8x256xf32>
    %117 = arith.maximumf %115, %116 : vector<8x256xf32>
    %118 = math.absf %115 : vector<8x256xf32>
    %cst_51 = arith.constant 0.000000e+00 : f32
    %119 = vector.broadcast %cst_51 : f32 to vector<8x256xf32>
    %120 = arith.subf %119, %118 : vector<8x256xf32>
    %121 = math.exp %120 : vector<8x256xf32>
    %cst_52 = arith.constant 1.000000e+00 : f32
    %122 = vector.broadcast %cst_52 : f32 to vector<8x256xf32>
    %123 = arith.addf %122, %121 : vector<8x256xf32>
    %124 = math.log %123 : vector<8x256xf32>
    %125 = arith.addf %117, %124 : vector<8x256xf32>
    %cst_53 = arith.constant 1.000000e-10 : f32
    %126 = vector.broadcast %cst_53 : f32 to vector<8x256xf32>
    %127 = arith.addf %125, %126 : vector<8x256xf32>
    %c0_54 = arith.constant 0 : index
    %c0_55 = arith.constant 0 : index
    %128 = vector.load %arg14[%c0_54, %c0_55] : memref<8x256xf32, #tpu.memory_space<vmem>>, vector<8x256xf32>
    %c0_56 = arith.constant 0 : index
    %c0_57 = arith.constant 0 : index
    %129 = vector.load %arg15[%c0_56, %c0_57] : memref<8x256xf32, #tpu.memory_space<vmem>>, vector<8x256xf32>
    %130 = math.log %127 : vector<8x256xf32>
    %cst_58 = arith.constant 0.000000e+00 : f32
    %131 = vector.broadcast %cst_58 : f32 to vector<8x256xf32>
    %132 = arith.subf %131, %130 : vector<8x256xf32>
    %cst_59 = arith.constant 5.000000e-01 : f32
    %133 = vector.broadcast %cst_59 : f32 to vector<8x256xf32>
    %134 = arith.mulf %133, %114 : vector<8x256xf32>
    %135 = arith.mulf %134, %114 : vector<8x256xf32>
    %136 = arith.addf %132, %135 : vector<8x256xf32>
    %137 = arith.mulf %114, %127 : vector<8x256xf32>
    %138 = arith.mulf %137, %128 : vector<8x256xf32>
    %139 = arith.addf %136, %138 : vector<8x256xf32>
    %140 = arith.mulf %127, %127 : vector<8x256xf32>
    %cst_60 = arith.constant 1.000000e+00 : f32
    %141 = vector.broadcast %cst_60 : f32 to vector<8x256xf32>
    %142 = arith.subf %140, %141 : vector<8x256xf32>
    %cst_61 = arith.constant 5.000000e-01 : f32
    %143 = vector.broadcast %cst_61 : f32 to vector<8x256xf32>
    %144 = arith.mulf %143, %142 : vector<8x256xf32>
    %145 = arith.mulf %144, %129 : vector<8x256xf32>
    %146 = arith.addf %139, %145 : vector<8x256xf32>
    %cst_62 = arith.constant dense<0.000000e+00> : vector<256xf32>
    %147 = vector.multi_reduction <add>, %146, %cst_62 [0] : vector<8x256xf32> to vector<256xf32>
    %148 = vector.shape_cast %147 : vector<256xf32> to vector<1x256xf32>
    %149 = arith.addf %76, %148 : vector<1x256xf32>
    %c0_63 = arith.constant 0 : index
    %c0_64 = arith.constant 0 : index
    %150 = vector.load %arg7[%c0_63, %c0_64] : memref<24x8xf32, #tpu.memory_space<vmem>>, vector<24x8xf32>
    %cst_65 = arith.constant dense<0.000000e+00> : vector<24x256xf32>
    %151 = tpu.matmul %150, %114, %cst_65 {dimension_numbers = #tpu.dot_dimension_numbers<[1], [0], [0], [1], [0, 0, 1, 1], [], []>} : vector<24x8xf32>, vector<8x256xf32>, vector<24x256xf32> -> vector<24x256xf32>
    %152 = vector.extract_strided_slice %151 {offsets = [0, 0], sizes = [8, 256], strides = [1, 1]} : vector<24x256xf32> to vector<8x256xf32>
    %153 = vector.extract_strided_slice %151 {offsets = [8, 0], sizes = [8, 256], strides = [1, 1]} : vector<24x256xf32> to vector<8x256xf32>
    %cst_66 = arith.constant dense<0.000000e+00> : vector<8x256xf32>
    %154 = tpu.matmul %153, %0, %cst_66 {dimension_numbers = #tpu.dot_dimension_numbers<[1], [0], [0], [1], [0, 0, 1, 1], [], []>} : vector<8x256xf32>, vector<256x256xf32>, vector<8x256xf32> -> vector<8x256xf32>
    %155 = arith.addf %152, %154 : vector<8x256xf32>
    %156 = vector.extract_strided_slice %151 {offsets = [16, 0], sizes = [8, 256], strides = [1, 1]} : vector<24x256xf32> to vector<8x256xf32>
    %cst_67 = arith.constant dense<0.000000e+00> : vector<8x256xf32>
    %157 = tpu.matmul %156, %1, %cst_67 {dimension_numbers = #tpu.dot_dimension_numbers<[1], [0], [0], [1], [0, 0, 1, 1], [], []>} : vector<8x256xf32>, vector<256x256xf32>, vector<8x256xf32> -> vector<8x256xf32>
    %158 = arith.addf %155, %157 : vector<8x256xf32>
    %159 = vector.extract_strided_slice %158 {offsets = [0, 0], sizes = [2, 256], strides = [1, 1]} : vector<8x256xf32> to vector<2x256xf32>
    %160 = vector.extract_strided_slice %159 {offsets = [0, 0], sizes = [1, 256], strides = [1, 1]} : vector<2x256xf32> to vector<1x256xf32>
    %161 = arith.mulf %160, %160 : vector<1x256xf32>
    %cst_68 = arith.constant dense<0.000000e+00> : vector<1x256xf32>
    %162 = tpu.matmul %161, %1, %cst_68 {dimension_numbers = #tpu.dot_dimension_numbers<[1], [0], [0], [1], [0, 0, 1, 1], [], []>} : vector<1x256xf32>, vector<256x256xf32>, vector<1x256xf32> -> vector<1x256xf32>
    %163 = math.rsqrt %162 : vector<1x256xf32>
    %164 = arith.mulf %160, %163 : vector<1x256xf32>
    %c0_69 = arith.constant 0 : index
    %c0_70 = arith.constant 0 : index
    %165 = vector.load %arg1[%c0_69, %c0_70] : memref<4x256xf32, #tpu.memory_space<vmem>>, vector<4x256xf32>
    %166 = vector.broadcast %164 : vector<1x256xf32> to vector<4x256xf32>
    %167 = arith.mulf %165, %166 : vector<4x256xf32>
    %c0_71 = arith.constant 0 : index
    %c0_72 = arith.constant 0 : index
    %168 = vector.load %arg16[%c0_71, %c0_72] : memref<4x256xf32, #tpu.memory_space<vmem>>, vector<4x256xf32>
    tpu.vector_store %arg16[%c0_71, %c0_72], %167 {strides = array<i32>} : memref<4x256xf32, #tpu.memory_space<vmem>>, vector<4x256xf32>,
    %c0_73 = arith.constant 0 : index
    %c0_74 = arith.constant 0 : index
    %169 = vector.load %arg4[%c0_73, %c0_74] : memref<256x4xf32, #tpu.memory_space<vmem>>, vector<256x4xf32>
    %cst_75 = arith.constant dense<0.000000e+00> : vector<1x4xf32>
    %170 = tpu.matmul %149, %169, %cst_75 {dimension_numbers = #tpu.dot_dimension_numbers<[1], [0], [0], [1], [0, 0, 1, 1], [], []>} : vector<1x256xf32>, vector<256x4xf32>, vector<1x4xf32> -> vector<1x4xf32>
    %c0_76 = arith.constant 0 : index
    %c0_77 = arith.constant 0 : index
    %171 = vector.load %arg17[%c0_76, %c0_77] : memref<1x4xf32, #tpu.memory_space<vmem>>, vector<1x4xf32>
    tpu.vector_store %arg17[%c0_76, %c0_77], %170 {strides = array<i32>} : memref<1x4xf32, #tpu.memory_space<vmem>>, vector<1x4xf32>,
    return
  }
}

</mosaic_0001>

<llo_original>
// kernel: tpu_custom_call.1
$region0: #{tpu_custom_call.1}
  #allocation0 [shape = 'u32[]', space=smem, size = 0x4, offset = 0x4, fixed_abs, tag = 'smem constant byte address 0x4 - core index']
  #allocation1 [shape = 'u32[72,128]{1,0:T(1,128)}', space=vmem, size = 0x9000, scoped, tag = 'internal scratch']
  %s0 = inlined_call_operand.vmem [shape: f32[8,256], index: 0, kind: input, shape index: {}]
  %s1 = inlined_call_operand.vmem [shape: f32[4,256], index: 1, kind: input, shape index: {}]
  %s2 = inlined_call_operand.hbm [shape: f32[256,256], index: 2, kind: input, shape index: {}]
  %s3 = inlined_call_operand.hbm [shape: f32[256,256], index: 3, kind: input, shape index: {}]
  %s4 = inlined_call_operand.vmem [shape: f32[256,4], index: 4, kind: input, shape index: {}]
  %s5 = inlined_call_operand.vmem [shape: f32[48,8], index: 5, kind: input, shape index: {}]
  %s6 = inlined_call_operand.vmem [shape: f32[48,8], index: 6, kind: input, shape index: {}]
  %s7 = inlined_call_operand.vmem [shape: f32[24,8], index: 7, kind: input, shape index: {}]
  %s8 = inlined_call_operand.vmem [shape: f32[16,1], index: 8, kind: input, shape index: {}]
  %s9 = inlined_call_operand.vmem [shape: f32[16,1], index: 9, kind: input, shape index: {}]
  %s10 = inlined_call_operand.vmem [shape: f32[8,256], index: 10, kind: input, shape index: {}]
  %s11 = inlined_call_operand.vmem [shape: f32[8,256], index: 11, kind: input, shape index: {}]
  %s12 = inlined_call_operand.vmem [shape: f32[16,1], index: 12, kind: input, shape index: {}]
  %s13 = inlined_call_operand.vmem [shape: f32[16,1], index: 13, kind: input, shape index: {}]
  %s14 = inlined_call_operand.vmem [shape: f32[8,256], index: 14, kind: input, shape index: {}]
  %s15 = inlined_call_operand.vmem [shape: f32[8,256], index: 15, kind: input, shape index: {}]
  %s16 = inlined_call_operand.hbm [shape: f32[4,256], index: 16, kind: output, shape index: {0}]
  %s17 = inlined_call_operand.hbm [shape: f32[1,4], index: 17, kind: output, shape index: {1}]
  %18 = xla_tuple %s16, %s17
  %s19 = sld [smem:[#allocation0]]
  $region90: #{tpu_custom_call.1} parent=0
    _
  %s21 = ssub.s32 1, %s19
  %s22 = scalar_select 0, %s21, %s19
  $region1: #{tpu_custom_call.1} parent=0
    #allocation2 [shape = 'u8[262144]{0}', space=vmem, size = 0x40000, scoped, tag = 'input window, operand 2, single buffered']
    #allocation3 [shape = 's32[1]{0}', space=sflag, size = 0x4, scoped, tag = 'scoped memory for tpu_custom_call.1']
    #allocation4 [shape = 's32[1]{0}', space=sflag, size = 0x4, scoped, tag = 'scoped memory for tpu_custom_call.1']
    #allocation5 [shape = 'u8[262144]{0}', space=vmem, size = 0x40000, scoped, tag = 'input window, operand 3, single buffered']
    #allocation6 [shape = 's32[1]{0}', space=sflag, size = 0x4, scoped, tag = 'scoped memory for tpu_custom_call.1']
    #allocation7 [shape = 'u8[4096]{0}', space=vmem, size = 0x1000, scoped, tag = 'output window, operand 0, single buffered']
    #allocation8 [shape = 'u8[512]{0}', space=vmem, size = 0x400, scoped, tag = 'output window, operand 1, single buffered']
    #allocation9 [shape = 's32[1]{0}', space=sflag, size = 0x4, scoped, tag = 'scoped memory for tpu_custom_call.1']
    %23 = vsyncpa [#allocation3], 0
    %24 = vsyncpa [#allocation6], 0
    %25 = vsyncpa [#allocation4], 0
    %26 = vsyncpa [#allocation9], 0
    // Predicated region
    $region2: #{tpu_custom_call.1} parent=1 // pred_check
      _
    $region3: #{tpu_custom_call.1} parent=1 // pred_check_branch
      %28 = sbr.rel (0) target = $region5
    $region4: #{tpu_custom_call.1} parent=1 // pred_region
      _
    $region5: #{tpu_custom_call.1} parent=1 // pred_fallthru
      _
    // Predicated region
    $region6: #{tpu_custom_call.1} parent=1 // pred_check
      _
    $region7: #{tpu_custom_call.1} parent=1 // pred_check_branch
      %30 = sbr.rel (0) target = $region9
    $region8: #{tpu_custom_call.1} parent=1 // pred_region
      _
    $region9: #{tpu_custom_call.1} parent=1 // pred_fallthru
      _
    // Predicated region
    $region10: #{tpu_custom_call.1} parent=1 // pred_check
      _
    $region11: #{tpu_custom_call.1} parent=1 // pred_check_branch
      %32 = sbr.rel (0) target = $region13
    $region12: #{tpu_custom_call.1} parent=1 // pred_region
      %34 = vsyncadd [#allocation3], 0
      %s35 = sshll.u32 %s2, 4
      %s36 = int_to_ptr.hbm [resolvable:$true] %s35
      %s37 = sshll.u32 [#allocation2], 4
      %s38 = int_to_ptr.vmem [resolvable:$true] %s37
      %43 = dma.hbm_to_vmem [thread:$0]  %s36, 8192, %s38, [#allocation3], 256, 256, 16
    $region13: #{tpu_custom_call.1} parent=1 // pred_fallthru
      _
    // Predicated region
    $region14: #{tpu_custom_call.1} parent=1 // pred_check
      _
    $region15: #{tpu_custom_call.1} parent=1 // pred_check_branch
      %45 = sbr.rel (0) target = $region17
    $region16: #{tpu_custom_call.1} parent=1 // pred_region
      %47 = vsyncadd [#allocation6], 0
      %s48 = sshll.u32 %s3, 4
      %s49 = int_to_ptr.hbm [resolvable:$true] %s48
      %s50 = sshll.u32 [#allocation5], 4
      %s51 = int_to_ptr.vmem [resolvable:$true] %s50
      %56 = dma.hbm_to_vmem [thread:$0]  %s49, 8192, %s51, [#allocation6], 256, 256, 16
    $region17: #{tpu_custom_call.1} parent=1 // pred_fallthru
      _
    // Predicated region
    $region18: #{tpu_custom_call.1} parent=1 // pred_check
      _
    $region19: #{tpu_custom_call.1} parent=1 // pred_check_branch
      %58 = sbr.rel (0) target = $region21
    $region20: #{tpu_custom_call.1} parent=1 // pred_region
      _
    $region21: #{tpu_custom_call.1} parent=1 // pred_fallthru
      _
    // Predicated region
    $region22: #{tpu_custom_call.1} parent=1 // pred_check
      _
    $region23: #{tpu_custom_call.1} parent=1 // pred_check_branch
      %60 = sbr.rel (0) target = $region25
    $region24: #{tpu_custom_call.1} parent=1 // pred_region
      _
    $region25: #{tpu_custom_call.1} parent=1 // pred_fallthru
      _
    // Predicated region
    $region26: #{tpu_custom_call.1} parent=1 // pred_check
      _
    $region27: #{tpu_custom_call.1} parent=1 // pred_check_branch
      %62 = sbr.rel (0) target = $region29
    $region28: #{tpu_custom_call.1} parent=1 // pred_region
      _
    $region29: #{tpu_custom_call.1} parent=1 // pred_fallthru
      _
    // Predicated region
    $region30: #{tpu_custom_call.1} parent=1 // pred_check
      _
    $region31: #{tpu_custom_call.1} parent=1 // pred_check_branch
      %64 = sbr.rel (0) target = $region33
    $region32: #{tpu_custom_call.1} parent=1 // pred_region
      _
    $region33: #{tpu_custom_call.1} parent=1 // pred_fallthru
      _
    // Predicated region
    $region34: #{tpu_custom_call.1} parent=1 // pred_check
      _
    $region35: #{tpu_custom_call.1} parent=1 // pred_check_branch
      %66 = sbr.rel (0) target = $region37
    $region36: #{tpu_custom_call.1} parent=1 // pred_region
      _
    $region37: #{tpu_custom_call.1} parent=1 // pred_fallthru
      _
    // Predicated region
    $region38: #{tpu_custom_call.1} parent=1 // pred_check
      _
    $region39: #{tpu_custom_call.1} parent=1 // pred_check_branch
      %68 = sbr.rel (0) target = $region41
    $region40: #{tpu_custom_call.1} parent=1 // pred_region
      _
    $region41: #{tpu_custom_call.1} parent=1 // pred_fallthru
      _
    // Predicated region
    $region42: #{tpu_custom_call.1} parent=1 // pred_check
      _
    $region43: #{tpu_custom_call.1} parent=1 // pred_check_branch
      %70 = sbr.rel (0) target = $region45
    $region44: #{tpu_custom_call.1} parent=1 // pred_region
      _
    $region45: #{tpu_custom_call.1} parent=1 // pred_fallthru
      _
    // Predicated region
    $region46: #{tpu_custom_call.1} parent=1 // pred_check
      _
    $region47: #{tpu_custom_call.1} parent=1 // pred_check_branch
      %72 = sbr.rel (0) target = $region49
    $region48: #{tpu_custom_call.1} parent=1 // pred_region
      _
    $region49: #{tpu_custom_call.1} parent=1 // pred_fallthru
      _
    // Predicated region
    $region50: #{tpu_custom_call.1} parent=1 // pred_check
      _
    $region51: #{tpu_custom_call.1} parent=1 // pred_check_branch
      %74 = sbr.rel (0) target = $region53
    $region52: #{tpu_custom_call.1} parent=1 // pred_region
      _
    $region53: #{tpu_custom_call.1} parent=1 // pred_fallthru
      _
    // Predicated region
    $region54: #{tpu_custom_call.1} parent=1 // pred_check
      _
    $region55: #{tpu_custom_call.1} parent=1 // pred_check_branch
      %76 = sbr.rel (0) target = $region57
    $region56: #{tpu_custom_call.1} parent=1 // pred_region
      _
    $region57: #{tpu_custom_call.1} parent=1 // pred_fallthru
      _
    // Predicated region
    $region58: #{tpu_custom_call.1} parent=1 // pred_check
      _
    $region59: #{tpu_custom_call.1} parent=1 // pred_check_branch
      %78 = sbr.rel (0) target = $region61
    $region60: #{tpu_custom_call.1} parent=1 // pred_region
      _
    $region61: #{tpu_custom_call.1} parent=1 // pred_fallthru
      _
    // Predicated region
    $region62: #{tpu_custom_call.1} parent=1 // pred_check
      _
    $region63: #{tpu_custom_call.1} parent=1 // pred_check_branch
      %80 = sbr.rel (0) target = $region65
    $region64: #{tpu_custom_call.1} parent=1 // pred_region
      _
    $region65: #{tpu_custom_call.1} parent=1 // pred_fallthru
      _
    // Predicated region
    $region66: #{tpu_custom_call.1} parent=1 // pred_check
      _
    $region67: #{tpu_custom_call.1} parent=1 // pred_check_branch
      %82 = sbr.rel (0) target = $region69
    $region68: #{tpu_custom_call.1} parent=1 // pred_region
      %84 = dma.done [#allocation3], 8192
    $region69: #{tpu_custom_call.1} parent=1 // pred_fallthru
      _
    // Predicated region
    $region70: #{tpu_custom_call.1} parent=1 // pred_check
      _
    $region71: #{tpu_custom_call.1} parent=1 // pred_check_branch
      %86 = sbr.rel (0) target = $region73
    $region72: #{tpu_custom_call.1} parent=1 // pred_region
      %88 = dma.done [#allocation6], 8192
    $region73: #{tpu_custom_call.1} parent=1 // pred_fallthru
      _
    %v89 = vld [vmem:[#allocation2] sm:$0xff]
    %v90 = vld [vmem:[#allocation2 + $0x8] sm:$0xff]
    %v91 = vld [vmem:[#allocation2 + $0x10] sm:$0xff]
    %v92 = vld [vmem:[#allocation2 + $0x18] sm:$0xff]
    %v93 = vld [vmem:[#allocation2 + $0x20] sm:$0xff]
    %v94 = vld [vmem:[#allocation2 + $0x28] sm:$0xff]
    %v95 = vld [vmem:[#allocation2 + $0x30] sm:$0xff]
    %v96 = vld [vmem:[#allocation2 + $0x38] sm:$0xff]
    %v97 = vld [vmem:[#allocation2 + $0x40] sm:$0xff]
    %v98 = vld [vmem:[#allocation2 + $0x48] sm:$0xff]
    %v99 = vld [vmem:[#allocation2 + $0x50] sm:$0xff]
    %v100 = vld [vmem:[#allocation2 + $0x58] sm:$0xff]
    %v101 = vld [vmem:[#allocation2 + $0x60] sm:$0xff]
    %v102 = vld [vmem:[#allocation2 + $0x68] sm:$0xff]
    %v103 = vld [vmem:[#allocation2 + $0x70] sm:$0xff]
    %v104 = vld [vmem:[#allocation2 + $0x78] sm:$0xff]
    %v105 = vld [vmem:[#allocation2 + $0x80] sm:$0xff]
    %v106 = vld [vmem:[#allocation2 + $0x88] sm:$0xff]
    %v107 = vld [vmem:[#allocation2 + $0x90] sm:$0xff]
    %v108 = vld [vmem:[#allocation2 + $0x98] sm:$0xff]
    %v109 = vld [vmem:[#allocation2 + $0xa0] sm:$0xff]
    %v110 = vld [vmem:[#allocation2 + $0xa8] sm:$0xff]
    %v111 = vld [vmem:[#allocation2 + $0xb0] sm:$0xff]
    %v112 = vld [vmem:[#allocation2 + $0xb8] sm:$0xff]
    %v113 = vld [vmem:[#allocation2 + $0xc0] sm:$0xff]
    %v114 = vld [vmem:[#allocation2 + $0xc8] sm:$0xff]
    %v115 = vld [vmem:[#allocation2 + $0xd0] sm:$0xff]
    %v116 = vld [vmem:[#allocation2 + $0xd8] sm:$0xff]
    %v117 = vld [vmem:[#allocation2 + $0xe0] sm:$0xff]
    %v118 = vld [vmem:[#allocation2 + $0xe8] sm:$0xff]
    %v119 = vld [vmem:[#allocation2 + $0xf0] sm:$0xff]
    %v120 = vld [vmem:[#allocation2 + $0xf8] sm:$0xff]
    %v121 = vld [vmem:[#allocation2 + $0x100] sm:$0xff]
    %v122 = vld [vmem:[#allocation2 + $0x108] sm:$0xff]
    %v123 = vld [vmem:[#allocation2 + $0x110] sm:$0xff]
    %v124 = vld [vmem:[#allocation2 + $0x118] sm:$0xff]
    %v125 = vld [vmem:[#allocation2 + $0x120] sm:$0xff]
    %v126 = vld [vmem:[#allocation2 + $0x128] sm:$0xff]
    %v127 = vld [vmem:[#allocation2 + $0x130] sm:$0xff]
    %v128 = vld [vmem:[#allocation2 + $0x138] sm:$0xff]
    %v129 = vld [vmem:[#allocation2 + $0x140] sm:$0xff]
    %v130 = vld [vmem:[#allocation2 + $0x148] sm:$0xff]
    %v131 = vld [vmem:[#allocation2 + $0x150] sm:$0xff]
    %v132 = vld [vmem:[#allocation2 + $0x158] sm:$0xff]
    %v133 = vld [vmem:[#allocation2 + $0x160] sm:$0xff]
    %v134 = vld [vmem:[#allocation2 + $0x168] sm:$0xff]
    %v135 = vld [vmem:[#allocation2 + $0x170] sm:$0xff]
    %v136 = vld [vmem:[#allocation2 + $0x178] sm:$0xff]
    %v137 = vld [vmem:[#allocation2 + $0x180] sm:$0xff]
    %v138 = vld [vmem:[#allocation2 + $0x188] sm:$0xff]
    %v139 = vld [vmem:[#allocation2 + $0x190] sm:$0xff]
    %v140 = vld [vmem:[#allocation2 + $0x198] sm:$0xff]
    %v141 = vld [vmem:[#allocation2 + $0x1a0] sm:$0xff]
    %v142 = vld [vmem:[#allocation2 + $0x1a8] sm:$0xff]
    %v143 = vld [vmem:[#allocation2 + $0x1b0] sm:$0xff]
    %v144 = vld [vmem:[#allocation2 + $0x1b8] sm:$0xff]
    %v145 = vld [vmem:[#allocation2 + $0x1c0] sm:$0xff]
    %v146 = vld [vmem:[#allocation2 + $0x1c8] sm:$0xff]
    %v147 = vld [vmem:[#allocation2 + $0x1d0] sm:$0xff]
    %v148 = vld [vmem:[#allocation2 + $0x1d8] sm:$0xff]
    %v149 = vld [vmem:[#allocation2 + $0x1e0] sm:$0xff]
    %v150 = vld [vmem:[#allocation2 + $0x1e8] sm:$0xff]
    %v151 = vld [vmem:[#allocation2 + $0x1f0] sm:$0xff]
    %v152 = vld [vmem:[#allocation2 + $0x1f8] sm:$0xff]
    %v153 = vld [vmem:[#allocation5] sm:$0xff]
    %v154 = vld [vmem:[#allocation5 + $0x8] sm:$0xff]
    %v155 = vld [vmem:[#allocation5 + $0x10] sm:$0xff]
    %v156 = vld [vmem:[#allocation5 + $0x18] sm:$0xff]
    %v157 = vld [vmem:[#allocation5 + $0x20] sm:$0xff]
    %v158 = vld [vmem:[#allocation5 + $0x28] sm:$0xff]
    %v159 = vld [vmem:[#allocation5 + $0x30] sm:$0xff]
    %v160 = vld [vmem:[#allocation5 + $0x38] sm:$0xff]
    %v161 = vld [vmem:[#allocation5 + $0x40] sm:$0xff]
    %v162 = vld [vmem:[#allocation5 + $0x48] sm:$0xff]
    %v163 = vld [vmem:[#allocation5 + $0x50] sm:$0xff]
    %v164 = vld [vmem:[#allocation5 + $0x58] sm:$0xff]
    %v165 = vld [vmem:[#allocation5 + $0x60] sm:$0xff]
    %v166 = vld [vmem:[#allocation5 + $0x68] sm:$0xff]
    %v167 = vld [vmem:[#allocation5 + $0x70] sm:$0xff]
    %v168 = vld [vmem:[#allocation5 + $0x78] sm:$0xff]
    %v169 = vld [vmem:[#allocation5 + $0x80] sm:$0xff]
    %v170 = vld [vmem:[#allocation5 + $0x88] sm:$0xff]
    %v171 = vld [vmem:[#allocation5 + $0x90] sm:$0xff]
    %v172 = vld [vmem:[#allocation5 + $0x98] sm:$0xff]
    %v173 = vld [vmem:[#allocation5 + $0xa0] sm:$0xff]
    %v174 = vld [vmem:[#allocation5 + $0xa8] sm:$0xff]
    %v175 = vld [vmem:[#allocation5 + $0xb0] sm:$0xff]
    %v176 = vld [vmem:[#allocation5 + $0xb8] sm:$0xff]
    %v177 = vld [vmem:[#allocation5 + $0xc0] sm:$0xff]
    %v178 = vld [vmem:[#allocation5 + $0xc8] sm:$0xff]
    %v179 = vld [vmem:[#allocation5 + $0xd0] sm:$0xff]
    %v180 = vld [vmem:[#allocation5 + $0xd8] sm:$0xff]
    %v181 = vld [vmem:[#allocation5 + $0xe0] sm:$0xff]
    %v182 = vld [vmem:[#allocation5 + $0xe8] sm:$0xff]
    %v183 = vld [vmem:[#allocation5 + $0xf0] sm:$0xff]
    %v184 = vld [vmem:[#allocation5 + $0xf8] sm:$0xff]
    %v185 = vld [vmem:[#allocation5 + $0x100] sm:$0xff]
    %v186 = vld [vmem:[#allocation5 + $0x108] sm:$0xff]
    %v187 = vld [vmem:[#allocation5 + $0x110] sm:$0xff]
    %v188 = vld [vmem:[#allocation5 + $0x118] sm:$0xff]
    %v189 = vld [vmem:[#allocation5 + $0x120] sm:$0xff]
    %v190 = vld [vmem:[#allocation5 + $0x128] sm:$0xff]
    %v191 = vld [vmem:[#allocation5 + $0x130] sm:$0xff]
    %v192 = vld [vmem:[#allocation5 + $0x138] sm:$0xff]
    %v193 = vld [vmem:[#allocation5 + $0x140] sm:$0xff]
    %v194 = vld [vmem:[#allocation5 + $0x148] sm:$0xff]
    %v195 = vld [vmem:[#allocation5 + $0x150] sm:$0xff]
    %v196 = vld [vmem:[#allocation5 + $0x158] sm:$0xff]
    %v197 = vld [vmem:[#allocation5 + $0x160] sm:$0xff]
    %v198 = vld [vmem:[#allocation5 + $0x168] sm:$0xff]
    %v199 = vld [vmem:[#allocation5 + $0x170] sm:$0xff]
    %v200 = vld [vmem:[#allocation5 + $0x178] sm:$0xff]
    %v201 = vld [vmem:[#allocation5 + $0x180] sm:$0xff]
    %v202 = vld [vmem:[#allocation5 + $0x188] sm:$0xff]
    %v203 = vld [vmem:[#allocation5 + $0x190] sm:$0xff]
    %v204 = vld [vmem:[#allocation5 + $0x198] sm:$0xff]
    %v205 = vld [vmem:[#allocation5 + $0x1a0] sm:$0xff]
    %v206 = vld [vmem:[#allocation5 + $0x1a8] sm:$0xff]
    %v207 = vld [vmem:[#allocation5 + $0x1b0] sm:$0xff]
    %v208 = vld [vmem:[#allocation5 + $0x1b8] sm:$0xff]
    %v209 = vld [vmem:[#allocation5 + $0x1c0] sm:$0xff]
    %v210 = vld [vmem:[#allocation5 + $0x1c8] sm:$0xff]
    %v211 = vld [vmem:[#allocation5 + $0x1d0] sm:$0xff]
    %v212 = vld [vmem:[#allocation5 + $0x1d8] sm:$0xff]
    %v213 = vld [vmem:[#allocation5 + $0x1e0] sm:$0xff]
    %v214 = vld [vmem:[#allocation5 + $0x1e8] sm:$0xff]
    %v215 = vld [vmem:[#allocation5 + $0x1f0] sm:$0xff]
    %v216 = vld [vmem:[#allocation5 + $0x1f8] sm:$0xff]
    %v217 = vld [vmem:[%s0] sm:$0xff]
    %v218 = vld [vmem:[%s0 + $0x8] sm:$0xff]
    %v219 = vld [vmem:[%s5] sm:$0xff]
    %v220 = vld [vmem:[%s5 + $0x8] sm:$0xff]
    %v221 = vld [vmem:[%s5 + $0x10] sm:$0xff]
    %v222 = vld [vmem:[%s5 + $0x18] sm:$0xff]
    %v223 = vld [vmem:[%s5 + $0x20] sm:$0xff]
    %v224 = vld [vmem:[%s5 + $0x28] sm:$0xff]
    %vm225 = vcmask 64512
    %v227 = vsel %vm225, %v219, 0
    %v230 = vsel %vm225, %v220, 0
    %v233 = vsel %vm225, %v221, 0
    %v236 = vsel %vm225, %v222, 0
    %v239 = vsel %vm225, %v223, 0
    %v242 = vsel %vm225, %v224, 0
    %244 = vmatpush.msra.mxu0 0.0
    %245 = vmatpush.msra.mxu0 0.0
    %246 = vmatpush.msra.mxu0 0.0
    %247 = vmatpush.msra.mxu0 0.0
    %248 = vmatpush.msra.mxu0 0.0
    %249 = vmatpush.msra.mxu0 0.0
    %250 = vmatpush.msra.mxu0 0.0
    %251 = vmatpush.msra.mxu0 0.0
    %252 = vmatpush.msra.mxu0 0.0
    %253 = vmatpush.msra.mxu0 0.0
    %254 = vmatpush.msra.mxu0 0.0
    %255 = vmatpush.msra.mxu0 0.0
    %256 = vmatpush.msra.mxu0 0.0
    %257 = vmatpush.msra.mxu0 0.0
    %258 = vmatpush.msra.mxu0 0.0
    %259 = vmatpush.msra.mxu0 %v217
    %260 = vmatmul.f32.gmra.mxu0 %v227
    %v261 = vpop.f32.mrf.mxu0
    %v262 = vadd.f32 0.0, %v261
    %263 = vmatmul.f32.gmra.mxu0 %v230
    %v264 = vpop.f32.mrf.mxu0
    %v265 = vadd.f32 0.0, %v264
    %266 = vmatmul.f32.gmra.mxu0 %v233
    %v267 = vpop.f32.mrf.mxu0
    %v268 = vadd.f32 0.0, %v267
    %269 = vmatmul.f32.gmra.mxu0 %v236
    %v270 = vpop.f32.mrf.mxu0
    %v271 = vadd.f32 0.0, %v270
    %272 = vmatmul.f32.gmra.mxu0 %v239
    %v273 = vpop.f32.mrf.mxu0
    %v274 = vadd.f32 0.0, %v273
    %275 = vmatmul.f32.gmra.mxu0 %v242
    %v276 = vpop.f32.mrf.mxu0
    %v277 = vadd.f32 0.0, %v276
    %278 = vdwg.mxu0
    %279 = vmatpush.msra.mxu0 0.0
    %280 = vmatpush.msra.mxu0 0.0
    %281 = vmatpush.msra.mxu0 0.0
    %282 = vmatpush.msra.mxu0 0.0
    %283 = vmatpush.msra.mxu0 0.0
    %284 = vmatpush.msra.mxu0 0.0
    %285 = vmatpush.msra.mxu0 0.0
    %286 = vmatpush.msra.mxu0 0.0
    %287 = vmatpush.msra.mxu0 0.0
    %288 = vmatpush.msra.mxu0 0.0
    %289 = vmatpush.msra.mxu0 0.0
    %290 = vmatpush.msra.mxu0 0.0
    %291 = vmatpush.msra.mxu0 0.0
    %292 = vmatpush.msra.mxu0 0.0
    %293 = vmatpush.msra.mxu0 0.0
    %294 = vmatpush.msra.mxu0 %v218
    %295 = vmatmul.f32.gmra.mxu0 %v227
    %v296 = vpop.f32.mrf.mxu0
    %v297 = vadd.f32 0.0, %v296
    %298 = vmatmul.f32.gmra.mxu0 %v230
    %v299 = vpop.f32.mrf.mxu0
    %v300 = vadd.f32 0.0, %v299
    %301 = vmatmul.f32.gmra.mxu0 %v233
    %v302 = vpop.f32.mrf.mxu0
    %v303 = vadd.f32 0.0, %v302
    %304 = vmatmul.f32.gmra.mxu0 %v236
    %v305 = vpop.f32.mrf.mxu0
    %v306 = vadd.f32 0.0, %v305
    %307 = vmatmul.f32.gmra.mxu0 %v239
    %v308 = vpop.f32.mrf.mxu0
    %v309 = vadd.f32 0.0, %v308
    %310 = vmatmul.f32.gmra.mxu0 %v242
    %v311 = vpop.f32.mrf.mxu0
    %v312 = vadd.f32 0.0, %v311
    %313 = vdwg.mxu0
    %314 = vmatpush.msra.mxu0 %v119
    %315 = vmatpush.msra.mxu0 %v117
    %316 = vmatpush.msra.mxu0 %v115
    %317 = vmatpush.msra.mxu0 %v113
    %318 = vmatpush.msra.mxu0 %v111
    %319 = vmatpush.msra.mxu0 %v109
    %320 = vmatpush.msra.mxu0 %v107
    %321 = vmatpush.msra.mxu0 %v105
    %322 = vmatpush.msra.mxu0 %v103
    %323 = vmatpush.msra.mxu0 %v101
    %324 = vmatpush.msra.mxu0 %v99
    %325 = vmatpush.msra.mxu0 %v97
    %326 = vmatpush.msra.mxu0 %v95
    %327 = vmatpush.msra.mxu0 %v93
    %328 = vmatpush.msra.mxu0 %v91
    %329 = vmatpush.msra.mxu0 %v89
    %330 = vmatmul.f32.gmra.mxu0 %v268
    %v331 = vpop.f32.mrf.mxu0
    %v332 = vadd.f32 0.0, %v331
    %333 = vmatmul.f32.gmra.mxu0 %v271
    %v334 = vpop.f32.mrf.mxu0
    %v335 = vadd.f32 0.0, %v334
    %336 = vdwg.mxu0
    %337 = vmatpush.msra.mxu0 %v151
    %338 = vmatpush.msra.mxu0 %v149
    %339 = vmatpush.msra.mxu0 %v147
    %340 = vmatpush.msra.mxu0 %v145
    %341 = vmatpush.msra.mxu0 %v143
    %342 = vmatpush.msra.mxu0 %v141
    %343 = vmatpush.msra.mxu0 %v139
    %344 = vmatpush.msra.mxu0 %v137
    %345 = vmatpush.msra.mxu0 %v135
    %346 = vmatpush.msra.mxu0 %v133
    %347 = vmatpush.msra.mxu0 %v131
    %348 = vmatpush.msra.mxu0 %v129
    %349 = vmatpush.msra.mxu0 %v127
    %350 = vmatpush.msra.mxu0 %v125
    %351 = vmatpush.msra.mxu0 %v123
    %352 = vmatpush.msra.mxu0 %v121
    %353 = vmatmul.f32.gmra.mxu0 %v303
    %v354 = vpop.f32.mrf.mxu0
    %v355 = vadd.f32 %v332, %v354
    %356 = vmatmul.f32.gmra.mxu0 %v306
    %v357 = vpop.f32.mrf.mxu0
    %v358 = vadd.f32 %v335, %v357
    %359 = vdwg.mxu0
    %360 = vmatpush.msra.mxu0 %v120
    %361 = vmatpush.msra.mxu0 %v118
    %362 = vmatpush.msra.mxu0 %v116
    %363 = vmatpush.msra.mxu0 %v114
    %364 = vmatpush.msra.mxu0 %v112
    %365 = vmatpush.msra.mxu0 %v110
    %366 = vmatpush.msra.mxu0 %v108
    %367 = vmatpush.msra.mxu0 %v106
    %368 = vmatpush.msra.mxu0 %v104
    %369 = vmatpush.msra.mxu0 %v102
    %370 = vmatpush.msra.mxu0 %v100
    %371 = vmatpush.msra.mxu0 %v98
    %372 = vmatpush.msra.mxu0 %v96
    %373 = vmatpush.msra.mxu0 %v94
    %374 = vmatpush.msra.mxu0 %v92
    %375 = vmatpush.msra.mxu0 %v90
    %376 = vmatmul.f32.gmra.mxu0 %v268
    %v377 = vpop.f32.mrf.mxu0
    %v378 = vadd.f32 0.0, %v377
    %379 = vmatmul.f32.gmra.mxu0 %v271
    %v380 = vpop.f32.mrf.mxu0
    %v381 = vadd.f32 0.0, %v380
    %382 = vdwg.mxu0
    %383 = vmatpush.msra.mxu0 %v152
    %384 = vmatpush.msra.mxu0 %v150
    %385 = vmatpush.msra.mxu0 %v148
    %386 = vmatpush.msra.mxu0 %v146
    %387 = vmatpush.msra.mxu0 %v144
    %388 = vmatpush.msra.mxu0 %v142
    %389 = vmatpush.msra.mxu0 %v140
    %390 = vmatpush.msra.mxu0 %v138
    %391 = vmatpush.msra.mxu0 %v136
    %392 = vmatpush.msra.mxu0 %v134
    %393 = vmatpush.msra.mxu0 %v132
    %394 = vmatpush.msra.mxu0 %v130
    %395 = vmatpush.msra.mxu0 %v128
    %396 = vmatpush.msra.mxu0 %v126
    %397 = vmatpush.msra.mxu0 %v124
    %398 = vmatpush.msra.mxu0 %v122
    %399 = vmatmul.f32.gmra.mxu0 %v303
    %v400 = vpop.f32.mrf.mxu0
    %v401 = vadd.f32 %v378, %v400
    %402 = vmatmul.f32.gmra.mxu0 %v306
    %v403 = vpop.f32.mrf.mxu0
    %v404 = vadd.f32 %v381, %v403
    %405 = vdwg.mxu0
    %v406 = vadd.f32 %v262, %v355
    %v407 = vadd.f32 %v297, %v401
    %v408 = vadd.f32 %v265, %v358
    %v409 = vadd.f32 %v300, %v404
    %410 = vmatpush.msra.mxu0 %v183
    %411 = vmatpush.msra.mxu0 %v181
    %412 = vmatpush.msra.mxu0 %v179
    %413 = vmatpush.msra.mxu0 %v177
    %414 = vmatpush.msra.mxu0 %v175
    %415 = vmatpush.msra.mxu0 %v173
    %416 = vmatpush.msra.mxu0 %v171
    %417 = vmatpush.msra.mxu0 %v169
    %418 = vmatpush.msra.mxu0 %v167
    %419 = vmatpush.msra.mxu0 %v165
    %420 = vmatpush.msra.mxu0 %v163
    %421 = vmatpush.msra.mxu0 %v161
    %422 = vmatpush.msra.mxu0 %v159
    %423 = vmatpush.msra.mxu0 %v157
    %424 = vmatpush.msra.mxu0 %v155
    %425 = vmatpush.msra.mxu0 %v153
    %426 = vmatmul.f32.gmra.mxu0 %v274
    %v427 = vpop.f32.mrf.mxu0
    %v428 = vadd.f32 0.0, %v427
    %429 = vmatmul.f32.gmra.mxu0 %v277
    %v430 = vpop.f32.mrf.mxu0
    %v431 = vadd.f32 0.0, %v430
    %432 = vdwg.mxu0
    %433 = vmatpush.msra.mxu0 %v215
    %434 = vmatpush.msra.mxu0 %v213
    %435 = vmatpush.msra.mxu0 %v211
    %436 = vmatpush.msra.mxu0 %v209
    %437 = vmatpush.msra.mxu0 %v207
    %438 = vmatpush.msra.mxu0 %v205
    %439 = vmatpush.msra.mxu0 %v203
    %440 = vmatpush.msra.mxu0 %v201
    %441 = vmatpush.msra.mxu0 %v199
    %442 = vmatpush.msra.mxu0 %v197
    %443 = vmatpush.msra.mxu0 %v195
    %444 = vmatpush.msra.mxu0 %v193
    %445 = vmatpush.msra.mxu0 %v191
    %446 = vmatpush.msra.mxu0 %v189
    %447 = vmatpush.msra.mxu0 %v187
    %448 = vmatpush.msra.mxu0 %v185
    %449 = vmatmul.f32.gmra.mxu0 %v309
    %v450 = vpop.f32.mrf.mxu0
    %v451 = vadd.f32 %v428, %v450
    %452 = vmatmul.f32.gmra.mxu0 %v312
    %v453 = vpop.f32.mrf.mxu0
    %v454 = vadd.f32 %v431, %v453
    %455 = vdwg.mxu0
    %456 = vmatpush.msra.mxu0 %v184
    %457 = vmatpush.msra.mxu0 %v182
    %458 = vmatpush.msra.mxu0 %v180
    %459 = vmatpush.msra.mxu0 %v178
    %460 = vmatpush.msra.mxu0 %v176
    %461 = vmatpush.msra.mxu0 %v174
    %462 = vmatpush.msra.mxu0 %v172
    %463 = vmatpush.msra.mxu0 %v170
    %464 = vmatpush.msra.mxu0 %v168
    %465 = vmatpush.msra.mxu0 %v166
    %466 = vmatpush.msra.mxu0 %v164
    %467 = vmatpush.msra.mxu0 %v162
    %468 = vmatpush.msra.mxu0 %v160
    %469 = vmatpush.msra.mxu0 %v158
    %470 = vmatpush.msra.mxu0 %v156
    %471 = vmatpush.msra.mxu0 %v154
    %472 = vmatmul.f32.gmra.mxu0 %v274
    %v473 = vpop.f32.mrf.mxu0
    %v474 = vadd.f32 0.0, %v473
    %475 = vmatmul.f32.gmra.mxu0 %v277
    %v476 = vpop.f32.mrf.mxu0
    %v477 = vadd.f32 0.0, %v476
    %478 = vdwg.mxu0
    %479 = vmatpush.msra.mxu0 %v216
    %480 = vmatpush.msra.mxu0 %v214
    %481 = vmatpush.msra.mxu0 %v212
    %482 = vmatpush.msra.mxu0 %v210
    %483 = vmatpush.msra.mxu0 %v208
    %484 = vmatpush.msra.mxu0 %v206
    %485 = vmatpush.msra.mxu0 %v204
    %486 = vmatpush.msra.mxu0 %v202
    %487 = vmatpush.msra.mxu0 %v200
    %488 = vmatpush.msra.mxu0 %v198
    %489 = vmatpush.msra.mxu0 %v196
    %490 = vmatpush.msra.mxu0 %v194
    %491 = vmatpush.msra.mxu0 %v192
    %492 = vmatpush.msra.mxu0 %v190
    %493 = vmatpush.msra.mxu0 %v188
    %494 = vmatpush.msra.mxu0 %v186
    %495 = vmatmul.f32.gmra.mxu0 %v309
    %v496 = vpop.f32.mrf.mxu0
    %v497 = vadd.f32 %v474, %v496
    %498 = vmatmul.f32.gmra.mxu0 %v312
    %v499 = vpop.f32.mrf.mxu0
    %v500 = vadd.f32 %v477, %v499
    %501 = vdwg.mxu0
    %v502 = vadd.f32 %v406, %v451
    %v503 = vadd.f32 %v407, %v497
    %v504 = vadd.f32 %v408, %v454
    %v505 = vadd.f32 %v409, %v500
    %v506 = vmax.f32 %v502, 0.0
    %v507 = vmax.f32 %v503, 0.0
    %v508 = vmax.f32 %v504, 0.0
    %v509 = vmax.f32 %v505, 0.0
    %v510 = vld [vmem:[%s8] sm:$0xff]
    %v511 = vld [vmem:[%s8 + $0x8] sm:$0xff]
    %v512 = vld [vmem:[%s9] sm:$0xff]
    %v513 = vld [vmem:[%s9 + $0x8] sm:$0xff]
    %v514 = vadd.f32 %v506, %v507
    %515 = vadd.xlane.f32.xlu0 %v514
    %v516 = vpop.xlane.xlu0 %515
    %v517 = vadd.f32 %v508, %v509
    %518 = vadd.xlane.f32.xlu0 %v517
    %v519 = vpop.xlane.xlu0 %518
    %v520 = vmul.f32 %v506, %v506
    %v521 = vmul.f32 %v507, %v507
    %v522 = vmul.f32 %v508, %v508
    %v523 = vmul.f32 %v509, %v509
    %v524 = vadd.f32 %v520, %v521
    %525 = vadd.xlane.f32.xlu0 %v524
    %v526 = vpop.xlane.xlu0 %525
    %v527 = vadd.f32 %v522, %v523
    %528 = vadd.xlane.f32.xlu0 %v527
    %v529 = vpop.xlane.xlu0 %528
    %v530 = vmul.f32 %v516, 0.00390625
    %v531 = vmul.f32 %v519, 0.00390625
    %v532 = vmul.f32 %v526, 0.00390625
    %v533 = vmul.f32 %v529, 0.00390625
    %v534 = vmul.f32 %v530, %v530
    %v535 = vmul.f32 %v531, %v531
    %v536 = vsub.f32 %v532, %v534
    %v537 = vsub.f32 %v533, %v535
    %v538 = vmax.f32 %v536, 0.0
    %v539 = vmax.f32 %v537, 0.0
    %v540 = vsub.f32 %v506, %v530
    %v541 = vsub.f32 %v507, %v530
    %v542 = vsub.f32 %v508, %v531
    %v543 = vsub.f32 %v509, %v531
    %v544 = vadd.f32 %v538, 1e-05
    %v545 = vadd.f32 %v539, 1e-05
    %v546 = vrsqrt.pop %v544
    %v547 = vmul.f32 %v546, %v544
    %v548 = vmul.f32 %v547, %v546
    %v549 = vmul.f32 0.5, %v548
    %v550 = vsub.f32 1.5, %v549
    %v551 = vmul.f32 %v546, %v550
    %vm552 = vweird.f32 %v544
    %vm553 = vweird.f32 %v546
    %vm554 = vmor %vm552, %vm553
    %v555 = vsel %vm554, %v546, %v551
    %v556 = vrsqrt.pop %v545
    %v557 = vmul.f32 %v556, %v545
    %v558 = vmul.f32 %v557, %v556
    %v559 = vmul.f32 0.5, %v558
    %v560 = vsub.f32 1.5, %v559
    %v561 = vmul.f32 %v556, %v560
    %vm562 = vweird.f32 %v545
    %vm563 = vweird.f32 %v556
    %vm564 = vmor %vm562, %vm563
    %v565 = vsel %vm564, %v556, %v561
    %v566 = vmul.f32 %v540, %v555
    %v567 = vmul.f32 %v541, %v555
    %v568 = vmul.f32 %v542, %v565
    %v569 = vmul.f32 %v543, %v565
    %571 = vset.pattern.permute.xlu0 0
    %572 = vperm.xlu0 %571, %v510
    %v573 = vpop.permute.xlu0 %572
    %576 = vset.pattern.permute.xlu0 0
    %577 = vperm.xlu0 %576, %v511
    %v578 = vpop.permute.xlu0 %577
    %v580 = vmul.f32 %v566, %v573
    %v581 = vmul.f32 %v567, %v573
    %v582 = vmul.f32 %v568, %v578
    %v583 = vmul.f32 %v569, %v578
    %585 = vset.pattern.permute.xlu0 0
    %586 = vperm.xlu0 %585, %v512
    %v587 = vpop.permute.xlu0 %586
    %590 = vset.pattern.permute.xlu0 0
    %591 = vperm.xlu0 %590, %v513
    %v592 = vpop.permute.xlu0 %591
    %v594 = vadd.f32 %v580, %v587
    %v595 = vadd.f32 %v581, %v587
    %v596 = vadd.f32 %v582, %v592
    %v597 = vadd.f32 %v583, %v592
    %v598 = vmax.f32 %v596, 0.0
    %v599 = vmax.f32 %v597, 0.0
    %v600 = vand.u32 2147483647, %v596
    %v601 = vand.u32 2147483647, %v597
    %v602 = vsub.f32 0.0, %v600
    %v603 = vsub.f32 0.0, %v601
    %v604 = vmul.f32 %v602, 1.442695
    %v605 = vpow.pop %v604
    %v606 = vmul.f32 %v603, 1.442695
    %v607 = vpow.pop %v606
    %v608 = vadd.f32 %v605, 1.0
    %v609 = vadd.f32 %v607, 1.0
    %v610 = vlog2.pop %v608
    %v611 = vmul.f32 %v610, 0.6931472
    %v612 = vlog2.pop %v609
    %v613 = vmul.f32 %v612, 0.6931472
    %v614 = vadd.f32 %v598, %v611
    %v615 = vadd.f32 %v599, %v613
    %v616 = vadd.f32 %v614, 1e-10
    %v617 = vadd.f32 %v615, 1e-10
    %v618 = vld [vmem:[%s10] sm:$0xff]
    %v619 = vld [vmem:[%s10 + $0x8] sm:$0xff]
    %v620 = vld [vmem:[%s11] sm:$0xff]
    %v621 = vld [vmem:[%s11 + $0x8] sm:$0xff]
    %v622 = vlog2.pop %v616
    %v623 = vmul.f32 %v622, 0.6931472
    %v624 = vlog2.pop %v617
    %v625 = vmul.f32 %v624, 0.6931472
    %v626 = vsub.f32 0.0, %v623
    %v627 = vsub.f32 0.0, %v625
    %v628 = vmul.f32 %v594, 0.5
    %v629 = vmul.f32 %v595, 0.5
    %v630 = vmul.f32 %v628, %v594
    %v631 = vmul.f32 %v629, %v595
    %v632 = vadd.f32 %v626, %v630
    %v633 = vadd.f32 %v627, %v631
    %v634 = vmul.f32 %v594, %v616
    %v635 = vmul.f32 %v595, %v617
    %v636 = vmul.f32 %v634, %v618
    %v637 = vmul.f32 %v635, %v619
    %v638 = vadd.f32 %v632, %v636
    %v639 = vadd.f32 %v633, %v637
    %v640 = vmul.f32 %v616, %v616
    %v641 = vmul.f32 %v617, %v617
    %v642 = vsub.f32 %v640, 1.0
    %v643 = vsub.f32 %v641, 1.0
    %v644 = vmul.f32 %v642, 0.5
    %v645 = vmul.f32 %v643, 0.5
    %v646 = vmul.f32 %v644, %v620
    %v647 = vmul.f32 %v645, %v621
    %v648 = vadd.f32 %v638, %v646
    %v649 = vadd.f32 %v639, %v647
    %v650 = vrot.slane %v648, 4
    %v651 = vadd.f32 %v648, %v650
    %v652 = vrot.slane %v651, 2
    %v653 = vadd.f32 %v651, %v652
    %v654 = vrot.slane %v653, 1
    %v655 = vadd.f32 %v653, %v654
    %v656 = vrot.slane %v649, 4
    %v657 = vadd.f32 %v649, %v656
    %v658 = vrot.slane %v657, 2
    %v659 = vadd.f32 %v657, %v658
    %v660 = vrot.slane %v659, 1
    %v661 = vadd.f32 %v659, %v660
    %v662 = vadd.f32 %v655, 0.0
    %v663 = vadd.f32 %v661, 0.0
    %v664 = vld [vmem:[%s6] sm:$0xff]
    %v665 = vld [vmem:[%s6 + $0x8] sm:$0xff]
    %v666 = vld [vmem:[%s6 + $0x10] sm:$0xff]
    %v667 = vld [vmem:[%s6 + $0x18] sm:$0xff]
    %v668 = vld [vmem:[%s6 + $0x20] sm:$0xff]
    %v669 = vld [vmem:[%s6 + $0x28] sm:$0xff]
    %v671 = vsel %vm225, %v664, 0
    %v674 = vsel %vm225, %v665, 0
    %v677 = vsel %vm225, %v666, 0
    %v680 = vsel %vm225, %v667, 0
    %v683 = vsel %vm225, %v668, 0
    %v686 = vsel %vm225, %v669, 0
    %688 = vmatpush.msra.mxu0 0.0
    %689 = vmatpush.msra.mxu0 0.0
    %690 = vmatpush.msra.mxu0 0.0
    %691 = vmatpush.msra.mxu0 0.0
    %692 = vmatpush.msra.mxu0 0.0
    %693 = vmatpush.msra.mxu0 0.0
    %694 = vmatpush.msra.mxu0 0.0
    %695 = vmatpush.msra.mxu0 0.0
    %696 = vmatpush.msra.mxu0 0.0
    %697 = vmatpush.msra.mxu0 0.0
    %698 = vmatpush.msra.mxu0 0.0
    %699 = vmatpush.msra.mxu0 0.0
    %700 = vmatpush.msra.mxu0 0.0
    %701 = vmatpush.msra.mxu0 0.0
    %702 = vmatpush.msra.mxu0 0.0
    %703 = vmatpush.msra.mxu0 %v594
    %704 = vmatmul.f32.gmra.mxu0 %v671
    %v705 = vpop.f32.mrf.mxu0
    %v706 = vadd.f32 0.0, %v705
    %707 = vmatmul.f32.gmra.mxu0 %v674
    %v708 = vpop.f32.mrf.mxu0
    %v709 = vadd.f32 0.0, %v708
    %710 = vmatmul.f32.gmra.mxu0 %v677
    %v711 = vpop.f32.mrf.mxu0
    %v712 = vadd.f32 0.0, %v711
    %713 = vmatmul.f32.gmra.mxu0 %v680
    %v714 = vpop.f32.mrf.mxu0
    %v715 = vadd.f32 0.0, %v714
    %716 = vmatmul.f32.gmra.mxu0 %v683
    %v717 = vpop.f32.mrf.mxu0
    %v718 = vadd.f32 0.0, %v717
    %719 = vmatmul.f32.gmra.mxu0 %v686
    %v720 = vpop.f32.mrf.mxu0
    %v721 = vadd.f32 0.0, %v720
    %722 = vdwg.mxu0
    %723 = vmatpush.msra.mxu0 0.0
    %724 = vmatpush.msra.mxu0 0.0
    %725 = vmatpush.msra.mxu0 0.0
    %726 = vmatpush.msra.mxu0 0.0
    %727 = vmatpush.msra.mxu0 0.0
    %728 = vmatpush.msra.mxu0 0.0
    %729 = vmatpush.msra.mxu0 0.0
    %730 = vmatpush.msra.mxu0 0.0
    %731 = vmatpush.msra.mxu0 0.0
    %732 = vmatpush.msra.mxu0 0.0
    %733 = vmatpush.msra.mxu0 0.0
    %734 = vmatpush.msra.mxu0 0.0
    %735 = vmatpush.msra.mxu0 0.0
    %736 = vmatpush.msra.mxu0 0.0
    %737 = vmatpush.msra.mxu0 0.0
    %738 = vmatpush.msra.mxu0 %v595
    %739 = vmatmul.f32.gmra.mxu0 %v671
    %v740 = vpop.f32.mrf.mxu0
    %v741 = vadd.f32 0.0, %v740
    %742 = vmatmul.f32.gmra.mxu0 %v674
    %v743 = vpop.f32.mrf.mxu0
    %v744 = vadd.f32 0.0, %v743
    %745 = vmatmul.f32.gmra.mxu0 %v677
    %v746 = vpop.f32.mrf.mxu0
    %v747 = vadd.f32 0.0, %v746
    %748 = vmatmul.f32.gmra.mxu0 %v680
    %v749 = vpop.f32.mrf.mxu0
    %v750 = vadd.f32 0.0, %v749
    %751 = vmatmul.f32.gmra.mxu0 %v683
    %v752 = vpop.f32.mrf.mxu0
    %v753 = vadd.f32 0.0, %v752
    %754 = vmatmul.f32.gmra.mxu0 %v686
    %v755 = vpop.f32.mrf.mxu0
    %v756 = vadd.f32 0.0, %v755
    %757 = vdwg.mxu0
    %758 = vmatpush.msra.mxu0 %v119
    %759 = vmatpush.msra.mxu0 %v117
    %760 = vmatpush.msra.mxu0 %v115
    %761 = vmatpush.msra.mxu0 %v113
    %762 = vmatpush.msra.mxu0 %v111
    %763 = vmatpush.msra.mxu0 %v109
    %764 = vmatpush.msra.mxu0 %v107
    %765 = vmatpush.msra.mxu0 %v105
    %766 = vmatpush.msra.mxu0 %v103
    %767 = vmatpush.msra.mxu0 %v101
    %768 = vmatpush.msra.mxu0 %v99
    %769 = vmatpush.msra.mxu0 %v97
    %770 = vmatpush.msra.mxu0 %v95
    %771 = vmatpush.msra.mxu0 %v93
    %772 = vmatpush.msra.mxu0 %v91
    %773 = vmatpush.msra.mxu0 %v89
    %774 = vmatmul.f32.gmra.mxu0 %v712
    %v775 = vpop.f32.mrf.mxu0
    %v776 = vadd.f32 0.0, %v775
    %777 = vmatmul.f32.gmra.mxu0 %v715
    %v778 = vpop.f32.mrf.mxu0
    %v779 = vadd.f32 0.0, %v778
    %780 = vdwg.mxu0
    %781 = vmatpush.msra.mxu0 %v151
    %782 = vmatpush.msra.mxu0 %v149
    %783 = vmatpush.msra.mxu0 %v147
    %784 = vmatpush.msra.mxu0 %v145
    %785 = vmatpush.msra.mxu0 %v143
    %786 = vmatpush.msra.mxu0 %v141
    %787 = vmatpush.msra.mxu0 %v139
    %788 = vmatpush.msra.mxu0 %v137
    %789 = vmatpush.msra.mxu0 %v135
    %790 = vmatpush.msra.mxu0 %v133
    %791 = vmatpush.msra.mxu0 %v131
    %792 = vmatpush.msra.mxu0 %v129
    %793 = vmatpush.msra.mxu0 %v127
    %794 = vmatpush.msra.mxu0 %v125
    %795 = vmatpush.msra.mxu0 %v123
    %796 = vmatpush.msra.mxu0 %v121
    %797 = vmatmul.f32.gmra.mxu0 %v747
    %v798 = vpop.f32.mrf.mxu0
    %v799 = vadd.f32 %v776, %v798
    %800 = vmatmul.f32.gmra.mxu0 %v750
    %v801 = vpop.f32.mrf.mxu0
    %v802 = vadd.f32 %v779, %v801
    %803 = vdwg.mxu0
    %804 = vmatpush.msra.mxu0 %v120
    %805 = vmatpush.msra.mxu0 %v118
    %806 = vmatpush.msra.mxu0 %v116
    %807 = vmatpush.msra.mxu0 %v114
    %808 = vmatpush.msra.mxu0 %v112
    %809 = vmatpush.msra.mxu0 %v110
    %810 = vmatpush.msra.mxu0 %v108
    %811 = vmatpush.msra.mxu0 %v106
    %812 = vmatpush.msra.mxu0 %v104
    %813 = vmatpush.msra.mxu0 %v102
    %814 = vmatpush.msra.mxu0 %v100
    %815 = vmatpush.msra.mxu0 %v98
    %816 = vmatpush.msra.mxu0 %v96
    %817 = vmatpush.msra.mxu0 %v94
    %818 = vmatpush.msra.mxu0 %v92
    %819 = vmatpush.msra.mxu0 %v90
    %820 = vmatmul.f32.gmra.mxu0 %v712
    %v821 = vpop.f32.mrf.mxu0
    %v822 = vadd.f32 0.0, %v821
    %823 = vmatmul.f32.gmra.mxu0 %v715
    %v824 = vpop.f32.mrf.mxu0
    %v825 = vadd.f32 0.0, %v824
    %826 = vdwg.mxu0
    %827 = vmatpush.msra.mxu0 %v152
    %828 = vmatpush.msra.mxu0 %v150
    %829 = vmatpush.msra.mxu0 %v148
    %830 = vmatpush.msra.mxu0 %v146
    %831 = vmatpush.msra.mxu0 %v144
    %832 = vmatpush.msra.mxu0 %v142
    %833 = vmatpush.msra.mxu0 %v140
    %834 = vmatpush.msra.mxu0 %v138
    %835 = vmatpush.msra.mxu0 %v136
    %836 = vmatpush.msra.mxu0 %v134
    %837 = vmatpush.msra.mxu0 %v132
    %838 = vmatpush.msra.mxu0 %v130
    %839 = vmatpush.msra.mxu0 %v128
    %840 = vmatpush.msra.mxu0 %v126
    %841 = vmatpush.msra.mxu0 %v124
    %842 = vmatpush.msra.mxu0 %v122
    %843 = vmatmul.f32.gmra.mxu0 %v747
    %v844 = vpop.f32.mrf.mxu0
    %v845 = vadd.f32 %v822, %v844
    %846 = vmatmul.f32.gmra.mxu0 %v750
    %v847 = vpop.f32.mrf.mxu0
    %v848 = vadd.f32 %v825, %v847
    %849 = vdwg.mxu0
    %v850 = vadd.f32 %v706, %v799
    %v851 = vadd.f32 %v741, %v845
    %v852 = vadd.f32 %v709, %v802
    %v853 = vadd.f32 %v744, %v848
    %854 = vmatpush.msra.mxu0 %v183
    %855 = vmatpush.msra.mxu0 %v181
    %856 = vmatpush.msra.mxu0 %v179
    %857 = vmatpush.msra.mxu0 %v177
    %858 = vmatpush.msra.mxu0 %v175
    %859 = vmatpush.msra.mxu0 %v173
    %860 = vmatpush.msra.mxu0 %v171
    %861 = vmatpush.msra.mxu0 %v169
    %862 = vmatpush.msra.mxu0 %v167
    %863 = vmatpush.msra.mxu0 %v165
    %864 = vmatpush.msra.mxu0 %v163
    %865 = vmatpush.msra.mxu0 %v161
    %866 = vmatpush.msra.mxu0 %v159
    %867 = vmatpush.msra.mxu0 %v157
    %868 = vmatpush.msra.mxu0 %v155
    %869 = vmatpush.msra.mxu0 %v153
    %870 = vmatmul.f32.gmra.mxu0 %v718
    %v871 = vpop.f32.mrf.mxu0
    %v872 = vadd.f32 0.0, %v871
    %873 = vmatmul.f32.gmra.mxu0 %v721
    %v874 = vpop.f32.mrf.mxu0
    %v875 = vadd.f32 0.0, %v874
    %876 = vdwg.mxu0
    %877 = vmatpush.msra.mxu0 %v215
    %878 = vmatpush.msra.mxu0 %v213
    %879 = vmatpush.msra.mxu0 %v211
    %880 = vmatpush.msra.mxu0 %v209
    %881 = vmatpush.msra.mxu0 %v207
    %882 = vmatpush.msra.mxu0 %v205
    %883 = vmatpush.msra.mxu0 %v203
    %884 = vmatpush.msra.mxu0 %v201
    %885 = vmatpush.msra.mxu0 %v199
    %886 = vmatpush.msra.mxu0 %v197
    %887 = vmatpush.msra.mxu0 %v195
    %888 = vmatpush.msra.mxu0 %v193
    %889 = vmatpush.msra.mxu0 %v191
    %890 = vmatpush.msra.mxu0 %v189
    %891 = vmatpush.msra.mxu0 %v187
    %892 = vmatpush.msra.mxu0 %v185
    %893 = vmatmul.f32.gmra.mxu0 %v753
    %v894 = vpop.f32.mrf.mxu0
    %v895 = vadd.f32 %v872, %v894
    %896 = vmatmul.f32.gmra.mxu0 %v756
    %v897 = vpop.f32.mrf.mxu0
    %v898 = vadd.f32 %v875, %v897
    %899 = vdwg.mxu0
    %900 = vmatpush.msra.mxu0 %v184
    %901 = vmatpush.msra.mxu0 %v182
    %902 = vmatpush.msra.mxu0 %v180
    %903 = vmatpush.msra.mxu0 %v178
    %904 = vmatpush.msra.mxu0 %v176
    %905 = vmatpush.msra.mxu0 %v174
    %906 = vmatpush.msra.mxu0 %v172
    %907 = vmatpush.msra.mxu0 %v170
    %908 = vmatpush.msra.mxu0 %v168
    %909 = vmatpush.msra.mxu0 %v166
    %910 = vmatpush.msra.mxu0 %v164
    %911 = vmatpush.msra.mxu0 %v162
    %912 = vmatpush.msra.mxu0 %v160
    %913 = vmatpush.msra.mxu0 %v158
    %914 = vmatpush.msra.mxu0 %v156
    %915 = vmatpush.msra.mxu0 %v154
    %916 = vmatmul.f32.gmra.mxu0 %v718
    %v917 = vpop.f32.mrf.mxu0
    %v918 = vadd.f32 0.0, %v917
    %919 = vmatmul.f32.gmra.mxu0 %v721
    %v920 = vpop.f32.mrf.mxu0
    %v921 = vadd.f32 0.0, %v920
    %922 = vdwg.mxu0
    %923 = vmatpush.msra.mxu0 %v216
    %924 = vmatpush.msra.mxu0 %v214
    %925 = vmatpush.msra.mxu0 %v212
    %926 = vmatpush.msra.mxu0 %v210
    %927 = vmatpush.msra.mxu0 %v208
    %928 = vmatpush.msra.mxu0 %v206
    %929 = vmatpush.msra.mxu0 %v204
    %930 = vmatpush.msra.mxu0 %v202
    %931 = vmatpush.msra.mxu0 %v200
    %932 = vmatpush.msra.mxu0 %v198
    %933 = vmatpush.msra.mxu0 %v196
    %934 = vmatpush.msra.mxu0 %v194
    %935 = vmatpush.msra.mxu0 %v192
    %936 = vmatpush.msra.mxu0 %v190
    %937 = vmatpush.msra.mxu0 %v188
    %938 = vmatpush.msra.mxu0 %v186
    %939 = vmatmul.f32.gmra.mxu0 %v753
    %v940 = vpop.f32.mrf.mxu0
    %v941 = vadd.f32 %v918, %v940
    %942 = vmatmul.f32.gmra.mxu0 %v756
    %v943 = vpop.f32.mrf.mxu0
    %v944 = vadd.f32 %v921, %v943
    %945 = vdwg.mxu0
    %v946 = vadd.f32 %v850, %v895
    %v947 = vadd.f32 %v851, %v941
    %v948 = vadd.f32 %v852, %v898
    %v949 = vadd.f32 %v853, %v944
    %v950 = vmax.f32 %v946, 0.0
    %v951 = vmax.f32 %v947, 0.0
    %v952 = vmax.f32 %v948, 0.0
    %v953 = vmax.f32 %v949, 0.0
    %v954 = vld [vmem:[%s12] sm:$0xff]
    %v955 = vld [vmem:[%s12 + $0x8] sm:$0xff]
    %v956 = vld [vmem:[%s13] sm:$0xff]
    %v957 = vld [vmem:[%s13 + $0x8] sm:$0xff]
    %v958 = vadd.f32 %v950, %v951
    %959 = vadd.xlane.f32.xlu0 %v958
    %v960 = vpop.xlane.xlu0 %959
    %v961 = vadd.f32 %v952, %v953
    %962 = vadd.xlane.f32.xlu0 %v961
    %v963 = vpop.xlane.xlu0 %962
    %v964 = vmul.f32 %v950, %v950
    %v965 = vmul.f32 %v951, %v951
    %v966 = vmul.f32 %v952, %v952
    %v967 = vmul.f32 %v953, %v953
    %v968 = vadd.f32 %v964, %v965
    %969 = vadd.xlane.f32.xlu0 %v968
    %v970 = vpop.xlane.xlu0 %969
    %v971 = vadd.f32 %v966, %v967
    %972 = vadd.xlane.f32.xlu0 %v971
    %v973 = vpop.xlane.xlu0 %972
    %v974 = vmul.f32 %v960, 0.00390625
    %v975 = vmul.f32 %v963, 0.00390625
    %v976 = vmul.f32 %v970, 0.00390625
    %v977 = vmul.f32 %v973, 0.00390625
    %v978 = vmul.f32 %v974, %v974
    %v979 = vmul.f32 %v975, %v975
    %v980 = vsub.f32 %v976, %v978
    %v981 = vsub.f32 %v977, %v979
    %v982 = vmax.f32 %v980, 0.0
    %v983 = vmax.f32 %v981, 0.0
    %v984 = vsub.f32 %v950, %v974
    %v985 = vsub.f32 %v951, %v974
    %v986 = vsub.f32 %v952, %v975
    %v987 = vsub.f32 %v953, %v975
    %v988 = vadd.f32 %v982, 1e-05
    %v989 = vadd.f32 %v983, 1e-05
    %v990 = vrsqrt.pop %v988
    %v991 = vmul.f32 %v990, %v988
    %v992 = vmul.f32 %v991, %v990
    %v993 = vmul.f32 0.5, %v992
    %v994 = vsub.f32 1.5, %v993
    %v995 = vmul.f32 %v990, %v994
    %vm996 = vweird.f32 %v988
    %vm997 = vweird.f32 %v990
    %vm998 = vmor %vm996, %vm997
    %v999 = vsel %vm998, %v990, %v995
    %v1000 = vrsqrt.pop %v989
    %v1001 = vmul.f32 %v1000, %v989
    %v1002 = vmul.f32 %v1001, %v1000
    %v1003 = vmul.f32 0.5, %v1002
    %v1004 = vsub.f32 1.5, %v1003
    %v1005 = vmul.f32 %v1000, %v1004
    %vm1006 = vweird.f32 %v989
    %vm1007 = vweird.f32 %v1000
    %vm1008 = vmor %vm1006, %vm1007
    %v1009 = vsel %vm1008, %v1000, %v1005
    %v1010 = vmul.f32 %v984, %v999
    %v1011 = vmul.f32 %v985, %v999
    %v1012 = vmul.f32 %v986, %v1009
    %v1013 = vmul.f32 %v987, %v1009
    %1015 = vset.pattern.permute.xlu0 0
    %1016 = vperm.xlu0 %1015, %v954
    %v1017 = vpop.permute.xlu0 %1016
    %1020 = vset.pattern.permute.xlu0 0
    %1021 = vperm.xlu0 %1020, %v955
    %v1022 = vpop.permute.xlu0 %1021
    %v1024 = vmul.f32 %v1010, %v1017
    %v1025 = vmul.f32 %v1011, %v1017
    %v1026 = vmul.f32 %v1012, %v1022
    %v1027 = vmul.f32 %v1013, %v1022
    %1029 = vset.pattern.permute.xlu0 0
    %1030 = vperm.xlu0 %1029, %v956
    %v1031 = vpop.permute.xlu0 %1030
    %1034 = vset.pattern.permute.xlu0 0
    %1035 = vperm.xlu0 %1034, %v957
    %v1036 = vpop.permute.xlu0 %1035
    %v1038 = vadd.f32 %v1024, %v1031
    %v1039 = vadd.f32 %v1025, %v1031
    %v1040 = vadd.f32 %v1026, %v1036
    %v1041 = vadd.f32 %v1027, %v1036
    %v1042 = vmax.f32 %v1040, 0.0
    %v1043 = vmax.f32 %v1041, 0.0
    %v1044 = vand.u32 2147483647, %v1040
    %v1045 = vand.u32 2147483647, %v1041
    %v1046 = vsub.f32 0.0, %v1044
    %v1047 = vsub.f32 0.0, %v1045
    %v1048 = vmul.f32 %v1046, 1.442695
    %v1049 = vpow.pop %v1048
    %v1050 = vmul.f32 %v1047, 1.442695
    %v1051 = vpow.pop %v1050
    %v1052 = vadd.f32 %v1049, 1.0
    %v1053 = vadd.f32 %v1051, 1.0
    %v1054 = vlog2.pop %v1052
    %v1055 = vmul.f32 %v1054, 0.6931472
    %v1056 = vlog2.pop %v1053
    %v1057 = vmul.f32 %v1056, 0.6931472
    %v1058 = vadd.f32 %v1042, %v1055
    %v1059 = vadd.f32 %v1043, %v1057
    %v1060 = vadd.f32 %v1058, 1e-10
    %v1061 = vadd.f32 %v1059, 1e-10
    %v1062 = vld [vmem:[%s14] sm:$0xff]
    %v1063 = vld [vmem:[%s14 + $0x8] sm:$0xff]
    %v1064 = vld [vmem:[%s15] sm:$0xff]
    %v1065 = vld [vmem:[%s15 + $0x8] sm:$0xff]
    %v1066 = vlog2.pop %v1060
    %v1067 = vmul.f32 %v1066, 0.6931472
    %v1068 = vlog2.pop %v1061
    %v1069 = vmul.f32 %v1068, 0.6931472
    %v1070 = vsub.f32 0.0, %v1067
    %v1071 = vsub.f32 0.0, %v1069
    %v1072 = vmul.f32 %v1038, 0.5
    %v1073 = vmul.f32 %v1039, 0.5
    %v1074 = vmul.f32 %v1072, %v1038
    %v1075 = vmul.f32 %v1073, %v1039
    %v1076 = vadd.f32 %v1070, %v1074
    %v1077 = vadd.f32 %v1071, %v1075
    %v1078 = vmul.f32 %v1038, %v1060
    %v1079 = vmul.f32 %v1039, %v1061
    %v1080 = vmul.f32 %v1078, %v1062
    %v1081 = vmul.f32 %v1079, %v1063
    %v1082 = vadd.f32 %v1076, %v1080
    %v1083 = vadd.f32 %v1077, %v1081
    %v1084 = vmul.f32 %v1060, %v1060
    %v1085 = vmul.f32 %v1061, %v1061
    %v1086 = vsub.f32 %v1084, 1.0
    %v1087 = vsub.f32 %v1085, 1.0
    %v1088 = vmul.f32 %v1086, 0.5
    %v1089 = vmul.f32 %v1087, 0.5
    %v1090 = vmul.f32 %v1088, %v1064
    %v1091 = vmul.f32 %v1089, %v1065
    %v1092 = vadd.f32 %v1082, %v1090
    %v1093 = vadd.f32 %v1083, %v1091
    %v1094 = vrot.slane %v1092, 4
    %v1095 = vadd.f32 %v1092, %v1094
    %v1096 = vrot.slane %v1095, 2
    %v1097 = vadd.f32 %v1095, %v1096
    %v1098 = vrot.slane %v1097, 1
    %v1099 = vadd.f32 %v1097, %v1098
    %v1100 = vrot.slane %v1093, 4
    %v1101 = vadd.f32 %v1093, %v1100
    %v1102 = vrot.slane %v1101, 2
    %v1103 = vadd.f32 %v1101, %v1102
    %v1104 = vrot.slane %v1103, 1
    %v1105 = vadd.f32 %v1103, %v1104
    %v1106 = vadd.f32 %v662, %v1099
    %v1107 = vadd.f32 %v663, %v1105
    %v1108 = vld [vmem:[%s7] sm:$0xff]
    %v1109 = vld [vmem:[%s7 + $0x8] sm:$0xff]
    %v1110 = vld [vmem:[%s7 + $0x10] sm:$0xff]
    %v1112 = vsel %vm225, %v1108, 0
    %v1115 = vsel %vm225, %v1109, 0
    %v1118 = vsel %vm225, %v1110, 0
    %1120 = vmatpush.msra.mxu0 0.0
    %1121 = vmatpush.msra.mxu0 0.0
    %1122 = vmatpush.msra.mxu0 0.0
    %1123 = vmatpush.msra.mxu0 0.0
    %1124 = vmatpush.msra.mxu0 0.0
    %1125 = vmatpush.msra.mxu0 0.0
    %1126 = vmatpush.msra.mxu0 0.0
    %1127 = vmatpush.msra.mxu0 0.0
    %1128 = vmatpush.msra.mxu0 0.0
    %1129 = vmatpush.msra.mxu0 0.0
    %1130 = vmatpush.msra.mxu0 0.0
    %1131 = vmatpush.msra.mxu0 0.0
    %1132 = vmatpush.msra.mxu0 0.0
    %1133 = vmatpush.msra.mxu0 0.0
    %1134 = vmatpush.msra.mxu0 0.0
    %1135 = vmatpush.msra.mxu0 %v1038
    %1136 = vmatmul.f32.gmra.mxu0 %v1112
    %v1137 = vpop.f32.mrf.mxu0
    %v1138 = vadd.f32 0.0, %v1137
    %1139 = vmatmul.f32.gmra.mxu0 %v1115
    %v1140 = vpop.f32.mrf.mxu0
    %v1141 = vadd.f32 0.0, %v1140
    %1142 = vmatmul.f32.gmra.mxu0 %v1118
    %v1143 = vpop.f32.mrf.mxu0
    %v1144 = vadd.f32 0.0, %v1143
    %1145 = vdwg.mxu0
    %1146 = vmatpush.msra.mxu0 0.0
    %1147 = vmatpush.msra.mxu0 0.0
    %1148 = vmatpush.msra.mxu0 0.0
    %1149 = vmatpush.msra.mxu0 0.0
    %1150 = vmatpush.msra.mxu0 0.0
    %1151 = vmatpush.msra.mxu0 0.0
    %1152 = vmatpush.msra.mxu0 0.0
    %1153 = vmatpush.msra.mxu0 0.0
    %1154 = vmatpush.msra.mxu0 0.0
    %1155 = vmatpush.msra.mxu0 0.0
    %1156 = vmatpush.msra.mxu0 0.0
    %1157 = vmatpush.msra.mxu0 0.0
    %1158 = vmatpush.msra.mxu0 0.0
    %1159 = vmatpush.msra.mxu0 0.0
    %1160 = vmatpush.msra.mxu0 0.0
    %1161 = vmatpush.msra.mxu0 %v1039
    %1162 = vmatmul.f32.gmra.mxu0 %v1112
    %v1163 = vpop.f32.mrf.mxu0
    %v1164 = vadd.f32 0.0, %v1163
    %1165 = vmatmul.f32.gmra.mxu0 %v1115
    %v1166 = vpop.f32.mrf.mxu0
    %v1167 = vadd.f32 0.0, %v1166
    %1168 = vmatmul.f32.gmra.mxu0 %v1118
    %v1169 = vpop.f32.mrf.mxu0
    %v1170 = vadd.f32 0.0, %v1169
    %1171 = vdwg.mxu0
    %1172 = vmatpush.msra.mxu0 %v119
    %1173 = vmatpush.msra.mxu0 %v117
    %1174 = vmatpush.msra.mxu0 %v115
    %1175 = vmatpush.msra.mxu0 %v113
    %1176 = vmatpush.msra.mxu0 %v111
    %1177 = vmatpush.msra.mxu0 %v109
    %1178 = vmatpush.msra.mxu0 %v107
    %1179 = vmatpush.msra.mxu0 %v105
    %1180 = vmatpush.msra.mxu0 %v103
    %1181 = vmatpush.msra.mxu0 %v101
    %1182 = vmatpush.msra.mxu0 %v99
    %1183 = vmatpush.msra.mxu0 %v97
    %1184 = vmatpush.msra.mxu0 %v95
    %1185 = vmatpush.msra.mxu0 %v93
    %1186 = vmatpush.msra.mxu0 %v91
    %1187 = vmatpush.msra.mxu0 %v89
    %1188 = vmatmul.f32.gmra.mxu0 %v1141
    %v1189 = vpop.f32.mrf.mxu0
    %v1190 = vadd.f32 0.0, %v1189
    %1191 = vdwg.mxu0
    %1192 = vmatpush.msra.mxu0 %v151
    %1193 = vmatpush.msra.mxu0 %v149
    %1194 = vmatpush.msra.mxu0 %v147
    %1195 = vmatpush.msra.mxu0 %v145
    %1196 = vmatpush.msra.mxu0 %v143
    %1197 = vmatpush.msra.mxu0 %v141
    %1198 = vmatpush.msra.mxu0 %v139
    %1199 = vmatpush.msra.mxu0 %v137
    %1200 = vmatpush.msra.mxu0 %v135
    %1201 = vmatpush.msra.mxu0 %v133
    %1202 = vmatpush.msra.mxu0 %v131
    %1203 = vmatpush.msra.mxu0 %v129
    %1204 = vmatpush.msra.mxu0 %v127
    %1205 = vmatpush.msra.mxu0 %v125
    %1206 = vmatpush.msra.mxu0 %v123
    %1207 = vmatpush.msra.mxu0 %v121
    %1208 = vmatmul.f32.gmra.mxu0 %v1167
    %v1209 = vpop.f32.mrf.mxu0
    %v1210 = vadd.f32 %v1190, %v1209
    %1211 = vdwg.mxu0
    %1212 = vmatpush.msra.mxu0 %v120
    %1213 = vmatpush.msra.mxu0 %v118
    %1214 = vmatpush.msra.mxu0 %v116
    %1215 = vmatpush.msra.mxu0 %v114
    %1216 = vmatpush.msra.mxu0 %v112
    %1217 = vmatpush.msra.mxu0 %v110
    %1218 = vmatpush.msra.mxu0 %v108
    %1219 = vmatpush.msra.mxu0 %v106
    %1220 = vmatpush.msra.mxu0 %v104
    %1221 = vmatpush.msra.mxu0 %v102
    %1222 = vmatpush.msra.mxu0 %v100
    %1223 = vmatpush.msra.mxu0 %v98
    %1224 = vmatpush.msra.mxu0 %v96
    %1225 = vmatpush.msra.mxu0 %v94
    %1226 = vmatpush.msra.mxu0 %v92
    %1227 = vmatpush.msra.mxu0 %v90
    %1228 = vmatmul.f32.gmra.mxu0 %v1141
    %v1229 = vpop.f32.mrf.mxu0
    %v1230 = vadd.f32 0.0, %v1229
    %1231 = vdwg.mxu0
    %1232 = vmatpush.msra.mxu0 %v152
    %1233 = vmatpush.msra.mxu0 %v150
    %1234 = vmatpush.msra.mxu0 %v148
    %1235 = vmatpush.msra.mxu0 %v146
    %1236 = vmatpush.msra.mxu0 %v144
    %1237 = vmatpush.msra.mxu0 %v142
    %1238 = vmatpush.msra.mxu0 %v140
    %1239 = vmatpush.msra.mxu0 %v138
    %1240 = vmatpush.msra.mxu0 %v136
    %1241 = vmatpush.msra.mxu0 %v134
    %1242 = vmatpush.msra.mxu0 %v132
    %1243 = vmatpush.msra.mxu0 %v130
    %1244 = vmatpush.msra.mxu0 %v128
    %1245 = vmatpush.msra.mxu0 %v126
    %1246 = vmatpush.msra.mxu0 %v124
    %1247 = vmatpush.msra.mxu0 %v122
    %1248 = vmatmul.f32.gmra.mxu0 %v1167
    %v1249 = vpop.f32.mrf.mxu0
    %v1250 = vadd.f32 %v1230, %v1249
    %1251 = vdwg.mxu0
    %v1252 = vadd.f32 %v1138, %v1210
    %v1253 = vadd.f32 %v1164, %v1250
    %1254 = vmatpush.msra.mxu0 %v183
    %1255 = vmatpush.msra.mxu0 %v181
    %1256 = vmatpush.msra.mxu0 %v179
    %1257 = vmatpush.msra.mxu0 %v177
    %1258 = vmatpush.msra.mxu0 %v175
    %1259 = vmatpush.msra.mxu0 %v173
    %1260 = vmatpush.msra.mxu0 %v171
    %1261 = vmatpush.msra.mxu0 %v169
    %1262 = vmatpush.msra.mxu0 %v167
    %1263 = vmatpush.msra.mxu0 %v165
    %1264 = vmatpush.msra.mxu0 %v163
    %1265 = vmatpush.msra.mxu0 %v161
    %1266 = vmatpush.msra.mxu0 %v159
    %1267 = vmatpush.msra.mxu0 %v157
    %1268 = vmatpush.msra.mxu0 %v155
    %1269 = vmatpush.msra.mxu0 %v153
    %1270 = vmatmul.f32.gmra.mxu0 %v1144
    %v1271 = vpop.f32.mrf.mxu0
    %v1272 = vadd.f32 0.0, %v1271
    %1273 = vdwg.mxu0
    %1274 = vmatpush.msra.mxu0 %v215
    %1275 = vmatpush.msra.mxu0 %v213
    %1276 = vmatpush.msra.mxu0 %v211
    %1277 = vmatpush.msra.mxu0 %v209
    %1278 = vmatpush.msra.mxu0 %v207
    %1279 = vmatpush.msra.mxu0 %v205
    %1280 = vmatpush.msra.mxu0 %v203
    %1281 = vmatpush.msra.mxu0 %v201
    %1282 = vmatpush.msra.mxu0 %v199
    %1283 = vmatpush.msra.mxu0 %v197
    %1284 = vmatpush.msra.mxu0 %v195
    %1285 = vmatpush.msra.mxu0 %v193
    %1286 = vmatpush.msra.mxu0 %v191
    %1287 = vmatpush.msra.mxu0 %v189
    %1288 = vmatpush.msra.mxu0 %v187
    %1289 = vmatpush.msra.mxu0 %v185
    %1290 = vmatmul.f32.gmra.mxu0 %v1170
    %v1291 = vpop.f32.mrf.mxu0
    %v1292 = vadd.f32 %v1272, %v1291
    %1293 = vdwg.mxu0
    %1294 = vmatpush.msra.mxu0 %v184
    %1295 = vmatpush.msra.mxu0 %v182
    %1296 = vmatpush.msra.mxu0 %v180
    %1297 = vmatpush.msra.mxu0 %v178
    %1298 = vmatpush.msra.mxu0 %v176
    %1299 = vmatpush.msra.mxu0 %v174
    %1300 = vmatpush.msra.mxu0 %v172
    %1301 = vmatpush.msra.mxu0 %v170
    %1302 = vmatpush.msra.mxu0 %v168
    %1303 = vmatpush.msra.mxu0 %v166
    %1304 = vmatpush.msra.mxu0 %v164
    %1305 = vmatpush.msra.mxu0 %v162
    %1306 = vmatpush.msra.mxu0 %v160
    %1307 = vmatpush.msra.mxu0 %v158
    %1308 = vmatpush.msra.mxu0 %v156
    %1309 = vmatpush.msra.mxu0 %v154
    %1310 = vmatmul.f32.gmra.mxu0 %v1144
    %v1311 = vpop.f32.mrf.mxu0
    %v1312 = vadd.f32 0.0, %v1311
    %1313 = vdwg.mxu0
    %1314 = vmatpush.msra.mxu0 %v216
    %1315 = vmatpush.msra.mxu0 %v214
    %1316 = vmatpush.msra.mxu0 %v212
    %1317 = vmatpush.msra.mxu0 %v210
    %1318 = vmatpush.msra.mxu0 %v208
    %1319 = vmatpush.msra.mxu0 %v206
    %1320 = vmatpush.msra.mxu0 %v204
    %1321 = vmatpush.msra.mxu0 %v202
    %1322 = vmatpush.msra.mxu0 %v200
    %1323 = vmatpush.msra.mxu0 %v198
    %1324 = vmatpush.msra.mxu0 %v196
    %1325 = vmatpush.msra.mxu0 %v194
    %1326 = vmatpush.msra.mxu0 %v192
    %1327 = vmatpush.msra.mxu0 %v190
    %1328 = vmatpush.msra.mxu0 %v188
    %1329 = vmatpush.msra.mxu0 %v186
    %1330 = vmatmul.f32.gmra.mxu0 %v1170
    %v1331 = vpop.f32.mrf.mxu0
    %v1332 = vadd.f32 %v1312, %v1331
    %1333 = vdwg.mxu0
    %v1334 = vadd.f32 %v1252, %v1292
    %v1335 = vadd.f32 %v1253, %v1332
    %v1336 = vmul.f32 %v1334, %v1334
    %v1337 = vmul.f32 %v1335, %v1335
    %1338 = vmatpush.msra.mxu0 %v183
    %1339 = vmatpush.msra.mxu0 %v181
    %1340 = vmatpush.msra.mxu0 %v179
    %1341 = vmatpush.msra.mxu0 %v177
    %1342 = vmatpush.msra.mxu0 %v175
    %1343 = vmatpush.msra.mxu0 %v173
    %1344 = vmatpush.msra.mxu0 %v171
    %1345 = vmatpush.msra.mxu0 %v169
    %1346 = vmatpush.msra.mxu0 %v167
    %1347 = vmatpush.msra.mxu0 %v165
    %1348 = vmatpush.msra.mxu0 %v163
    %1349 = vmatpush.msra.mxu0 %v161
    %1350 = vmatpush.msra.mxu0 %v159
    %1351 = vmatpush.msra.mxu0 %v157
    %1352 = vmatpush.msra.mxu0 %v155
    %1353 = vmatpush.msra.mxu0 %v153
    %1354 = vmatmul.f32.gmra.mxu0 %v1336
    %v1355 = vpop.f32.mrf.mxu0
    %v1356 = vadd.f32 0.0, %v1355
    %1357 = vdwg.mxu0
    %1358 = vmatpush.msra.mxu0 %v215
    %1359 = vmatpush.msra.mxu0 %v213
    %1360 = vmatpush.msra.mxu0 %v211
    %1361 = vmatpush.msra.mxu0 %v209
    %1362 = vmatpush.msra.mxu0 %v207
    %1363 = vmatpush.msra.mxu0 %v205
    %1364 = vmatpush.msra.mxu0 %v203
    %1365 = vmatpush.msra.mxu0 %v201
    %1366 = vmatpush.msra.mxu0 %v199
    %1367 = vmatpush.msra.mxu0 %v197
    %1368 = vmatpush.msra.mxu0 %v195
    %1369 = vmatpush.msra.mxu0 %v193
    %1370 = vmatpush.msra.mxu0 %v191
    %1371 = vmatpush.msra.mxu0 %v189
    %1372 = vmatpush.msra.mxu0 %v187
    %1373 = vmatpush.msra.mxu0 %v185
    %1374 = vmatmul.f32.gmra.mxu0 %v1337
    %v1375 = vpop.f32.mrf.mxu0
    %v1376 = vadd.f32 %v1356, %v1375
    %1377 = vdwg.mxu0
    %1378 = vmatpush.msra.mxu0 %v184
    %1379 = vmatpush.msra.mxu0 %v182
    %1380 = vmatpush.msra.mxu0 %v180
    %1381 = vmatpush.msra.mxu0 %v178
    %1382 = vmatpush.msra.mxu0 %v176
    %1383 = vmatpush.msra.mxu0 %v174
    %1384 = vmatpush.msra.mxu0 %v172
    %1385 = vmatpush.msra.mxu0 %v170
    %1386 = vmatpush.msra.mxu0 %v168
    %1387 = vmatpush.msra.mxu0 %v166
    %1388 = vmatpush.msra.mxu0 %v164
    %1389 = vmatpush.msra.mxu0 %v162
    %1390 = vmatpush.msra.mxu0 %v160
    %1391 = vmatpush.msra.mxu0 %v158
    %1392 = vmatpush.msra.mxu0 %v156
    %1393 = vmatpush.msra.mxu0 %v154
    %1394 = vmatmul.f32.gmra.mxu0 %v1336
    %v1395 = vpop.f32.mrf.mxu0
    %v1396 = vadd.f32 0.0, %v1395
    %1397 = vdwg.mxu0
    %1398 = vmatpush.msra.mxu0 %v216
    %1399 = vmatpush.msra.mxu0 %v214
    %1400 = vmatpush.msra.mxu0 %v212
    %1401 = vmatpush.msra.mxu0 %v210
    %1402 = vmatpush.msra.mxu0 %v208
    %1403 = vmatpush.msra.mxu0 %v206
    %1404 = vmatpush.msra.mxu0 %v204
    %1405 = vmatpush.msra.mxu0 %v202
    %1406 = vmatpush.msra.mxu0 %v200
    %1407 = vmatpush.msra.mxu0 %v198
    %1408 = vmatpush.msra.mxu0 %v196
    %1409 = vmatpush.msra.mxu0 %v194
    %1410 = vmatpush.msra.mxu0 %v192
    %1411 = vmatpush.msra.mxu0 %v190
    %1412 = vmatpush.msra.mxu0 %v188
    %1413 = vmatpush.msra.mxu0 %v186
    %1414 = vmatmul.f32.gmra.mxu0 %v1337
    %v1415 = vpop.f32.mrf.mxu0
    %v1416 = vadd.f32 %v1396, %v1415
    %1417 = vdwg.mxu0
    %v1418 = vrsqrt.pop %v1376
    %v1419 = vmul.f32 %v1418, %v1376
    %v1420 = vmul.f32 %v1419, %v1418
    %v1421 = vmul.f32 0.5, %v1420
    %v1422 = vsub.f32 1.5, %v1421
    %v1423 = vmul.f32 %v1418, %v1422
    %vm1424 = vweird.f32 %v1376
    %vm1425 = vweird.f32 %v1418
    %vm1426 = vmor %vm1424, %vm1425
    %v1427 = vsel %vm1426, %v1418, %v1423
    %v1428 = vrsqrt.pop %v1416
    %v1429 = vmul.f32 %v1428, %v1416
    %v1430 = vmul.f32 %v1429, %v1428
    %v1431 = vmul.f32 0.5, %v1430
    %v1432 = vsub.f32 1.5, %v1431
    %v1433 = vmul.f32 %v1428, %v1432
    %vm1434 = vweird.f32 %v1416
    %vm1435 = vweird.f32 %v1428
    %vm1436 = vmor %vm1434, %vm1435
    %v1437 = vsel %vm1436, %v1428, %v1433
    %v1438 = vmul.f32 %v1334, %v1427
    %v1439 = vmul.f32 %v1335, %v1437
    %v1440 = vld [vmem:[%s1] sm:$0xff]
    %v1441 = vperm.slane %v1438, 0
    %v1442 = vperm.slane %v1439, 0
    %v1445 = vrot.slane %v1442, 4
    %vm1446 = vcmask 1043456
    %v1447 = vsel %vm1446, %v1441, %v1445
    %v1449 = vmul.f32 %v1440, %v1447
    %1450 = vst [vmem:[#allocation7] sm:$0xff] %v1449
    %v1451 = vld [vmem:[%s4] sm:$0xff]
    %v1452 = vld [vmem:[%s4 + $0x8] sm:$0xff]
    %v1453 = vld [vmem:[%s4 + $0x10] sm:$0xff]
    %v1454 = vld [vmem:[%s4 + $0x18] sm:$0xff]
    %v1455 = vld [vmem:[%s4 + $0x20] sm:$0xff]
    %v1456 = vld [vmem:[%s4 + $0x28] sm:$0xff]
    %v1457 = vld [vmem:[%s4 + $0x30] sm:$0xff]
    %v1458 = vld [vmem:[%s4 + $0x38] sm:$0xff]
    %v1459 = vld [vmem:[%s4 + $0x40] sm:$0xff]
    %v1460 = vld [vmem:[%s4 + $0x48] sm:$0xff]
    %v1461 = vld [vmem:[%s4 + $0x50] sm:$0xff]
    %v1462 = vld [vmem:[%s4 + $0x58] sm:$0xff]
    %v1463 = vld [vmem:[%s4 + $0x60] sm:$0xff]
    %v1464 = vld [vmem:[%s4 + $0x68] sm:$0xff]
    %v1465 = vld [vmem:[%s4 + $0x70] sm:$0xff]
    %v1466 = vld [vmem:[%s4 + $0x78] sm:$0xff]
    %v1467 = vld [vmem:[%s4 + $0x80] sm:$0xff]
    %v1468 = vld [vmem:[%s4 + $0x88] sm:$0xff]
    %v1469 = vld [vmem:[%s4 + $0x90] sm:$0xff]
    %v1470 = vld [vmem:[%s4 + $0x98] sm:$0xff]
    %v1471 = vld [vmem:[%s4 + $0xa0] sm:$0xff]
    %v1472 = vld [vmem:[%s4 + $0xa8] sm:$0xff]
    %v1473 = vld [vmem:[%s4 + $0xb0] sm:$0xff]
    %v1474 = vld [vmem:[%s4 + $0xb8] sm:$0xff]
    %v1475 = vld [vmem:[%s4 + $0xc0] sm:$0xff]
    %v1476 = vld [vmem:[%s4 + $0xc8] sm:$0xff]
    %v1477 = vld [vmem:[%s4 + $0xd0] sm:$0xff]
    %v1478 = vld [vmem:[%s4 + $0xd8] sm:$0xff]
    %v1479 = vld [vmem:[%s4 + $0xe0] sm:$0xff]
    %v1480 = vld [vmem:[%s4 + $0xe8] sm:$0xff]
    %v1481 = vld [vmem:[%s4 + $0xf0] sm:$0xff]
    %v1482 = vld [vmem:[%s4 + $0xf8] sm:$0xff]
    %1483 = vmatpush.msra.mxu0 %v1466
    %1484 = vmatpush.msra.mxu0 %v1465
    %1485 = vmatpush.msra.mxu0 %v1464
    %1486 = vmatpush.msra.mxu0 %v1463
    %1487 = vmatpush.msra.mxu0 %v1462
    %1488 = vmatpush.msra.mxu0 %v1461
    %1489 = vmatpush.msra.mxu0 %v1460
    %1490 = vmatpush.msra.mxu0 %v1459
    %1491 = vmatpush.msra.mxu0 %v1458
    %1492 = vmatpush.msra.mxu0 %v1457
    %1493 = vmatpush.msra.mxu0 %v1456
    %1494 = vmatpush.msra.mxu0 %v1455
    %1495 = vmatpush.msra.mxu0 %v1454
    %1496 = vmatpush.msra.mxu0 %v1453
    %1497 = vmatpush.msra.mxu0 %v1452
    %1498 = vmatpush.msra.mxu0 %v1451
    %1499 = vmatmul.f32.gmra.mxu0 %v1106
    %v1500 = vpop.f32.mrf.mxu0
    %v1501 = vadd.f32 0.0, %v1500
    %1502 = vdwg.mxu0
    %1503 = vmatpush.msra.mxu0 %v1482
    %1504 = vmatpush.msra.mxu0 %v1481
    %1505 = vmatpush.msra.mxu0 %v1480
    %1506 = vmatpush.msra.mxu0 %v1479
    %1507 = vmatpush.msra.mxu0 %v1478
    %1508 = vmatpush.msra.mxu0 %v1477
    %1509 = vmatpush.msra.mxu0 %v1476
    %1510 = vmatpush.msra.mxu0 %v1475
    %1511 = vmatpush.msra.mxu0 %v1474
    %1512 = vmatpush.msra.mxu0 %v1473
    %1513 = vmatpush.msra.mxu0 %v1472
    %1514 = vmatpush.msra.mxu0 %v1471
    %1515 = vmatpush.msra.mxu0 %v1470
    %1516 = vmatpush.msra.mxu0 %v1469
    %1517 = vmatpush.msra.mxu0 %v1468
    %1518 = vmatpush.msra.mxu0 %v1467
    %1519 = vmatmul.f32.gmra.mxu0 %v1107
    %v1520 = vpop.f32.mrf.mxu0
    %v1521 = vadd.f32 %v1501, %v1520
    %1522 = vdwg.mxu0
    %vm1523 = vcmask 24576
    %1524 = vst.msk [vmem:[#allocation8] sm:$0x1] %vm1523, %v1521
    // Predicated region
    $region74: #{tpu_custom_call.1} parent=1 // pred_check
      _
    $region75: #{tpu_custom_call.1} parent=1 // pred_check_branch
      %1526 = sbr.rel (0) target = $region77
    $region76: #{tpu_custom_call.1} parent=1 // pred_region
      %1528 = vsyncadd [#allocation4], 0
      %s1530 = sshll.u32 [#allocation7], 4
      %s1531 = int_to_ptr.vmem [resolvable:$true] %s1530
      %s1532 = sshll.u32 %s16, 4
      %s1533 = int_to_ptr.hbm [resolvable:$true] %s1532
      %1535 = dma.vmem_to_hbm [thread:$0]  %s1531, 128, %s1533, [#allocation4]
    $region77: #{tpu_custom_call.1} parent=1 // pred_fallthru
      _
    // Predicated region
    $region78: #{tpu_custom_call.1} parent=1 // pred_check
      _
    $region79: #{tpu_custom_call.1} parent=1 // pred_check_branch
      %1537 = sbr.rel (0) target = $region81
    $region80: #{tpu_custom_call.1} parent=1 // pred_region
      %1539 = vsyncadd [#allocation9], 0
      %s1541 = sshll.u32 [#allocation8], 4
      %s1542 = int_to_ptr.vmem [resolvable:$true] %s1541
      %s1543 = sshll.u32 %s17, 4
      %s1544 = int_to_ptr.hbm [resolvable:$true] %s1543
      %1546 = dma.vmem_to_hbm [thread:$0]  %s1542, 16, %s1544, [#allocation9]
    $region81: #{tpu_custom_call.1} parent=1 // pred_fallthru
      _
    // Predicated region
    $region82: #{tpu_custom_call.1} parent=1 // pred_check
      _
    $region83: #{tpu_custom_call.1} parent=1 // pred_check_branch
      %1548 = sbr.rel (0) target = $region85
    $region84: #{tpu_custom_call.1} parent=1 // pred_region
      %1550 = dma.done [#allocation4], 128
    $region85: #{tpu_custom_call.1} parent=1 // pred_fallthru
      _
    // Predicated region
    $region86: #{tpu_custom_call.1} parent=1 // pred_check
      _
    $region87: #{tpu_custom_call.1} parent=1 // pred_check_branch
      %1552 = sbr.rel (0) target = $region89
    $region88: #{tpu_custom_call.1} parent=1 // pred_region
      %1554 = dma.done [#allocation9], 16
    $region89: #{tpu_custom_call.1} parent=1 // pred_fallthru
      _
    %1555 = vsyncpa [#allocation3], 1
    %1556 = vsyncpa [#allocation6], 1
    %1557 = vsyncpa [#allocation4], 1
    %1558 = vsyncpa [#allocation9], 1

</llo_original>
